<compile_context>
chip_gen: v5e
topology: v5e:2x2
jax: 0.10.0
libtpu: 0.0.40
codegen_flags: <defaults>
</compile_context>

<pallas_src>
import functools

import jax
import jax.numpy as jnp
from jax.experimental import pallas as pl
from jax.experimental.pallas import tpu as pltpu

_LANE = 128
_SUBLANE_BF16 = 16


def _round_up(x, m):
    return (x + m - 1) // m * m


def _pick_tiles():
    """Per-generation MXU-friendly max tile sizes (dst rows, src cols)."""
    try:
        kind = jax.devices()[0].device_kind.lower()
    except Exception:
        kind = ""
    if "v5 lite" in kind or "v5e" in kind or "v5lite" in kind:
        return 128, 256     # v5e: 4x128x128 MXUs, 16 MiB default scoped VMEM
    return 256, 512         # v6e / v7x: 2x256x256 MXU


def _choose(n, max_tile, align):
    """Return (tile, padded_extent) for one dimension."""
    aligned = _round_up(n, align)
    if aligned <= max_tile:
        return aligned, aligned
    return max_tile, _round_up(n, max_tile)


def _fit_rows(h, rows):
    """Zero-pad or truncate h to `rows` rows (only ever drops padding rows)."""
    cur = h.shape[0]
    if cur == rows:
        return h
    if cur > rows:
        return h[:rows]
    return jnp.pad(h, ((0, rows - cur), (0, 0)))


def _sage_layer_kernel(a_ref, inv_ref, hsrc_ref, hdst_ref, ws_ref, wn_ref,
                       b_ref, out_ref, acc_ref, *, apply_relu):
    """One SAGEConv 'mean' layer, tiled over (dst tiles, src/K tiles)."""
    k = pl.program_id(1)

    @pl.when(k == 0)
    def _init():
        acc_ref[...] = jnp.zeros_like(acc_ref)

    # Raw neighbor-sum aggregation: bf16 MXU inputs, f32 accumulation.
    acc_ref[...] += jnp.dot(a_ref[...],
                            hsrc_ref[...].astype(jnp.bfloat16),
                            preferred_element_type=jnp.float32)

    @pl.when(k == pl.num_programs(1) - 1)
    def _finalize():
        # Exact mean: scale the f32 neighbor sum by 1/deg (0 for isolated dst).
        h_neigh = acc_ref[...] * inv_ref[...]
        h_dst = hdst_ref[...].astype(jnp.bfloat16)
        # Two dots accumulated in f32 (no concat temporary).
        out = jnp.dot(h_dst, ws_ref[...], preferred_element_type=jnp.float32)
        out = out + jnp.dot(h_neigh.astype(jnp.bfloat16), wn_ref[...],
                            preferred_element_type=jnp.float32)
        out = out + b_ref[...]
        if apply_relu:
            out = jnp.maximum(out, 0.0)
        # TODO(synk): nn.Dropout(0.3) is stochastic in training; identity in eval mode.
        out_ref[...] = out.astype(out_ref.dtype)


def _sage_layer(adj, h, w_self, w_neigh, bias, *, apply_relu, out_dtype,
                tm_max, tk_max):
    """Run one SAGEConv layer as a tiled pallas_call.

    adj: dense 0/1 adjacency [n_dst, n_src]; h: features [>=n_src, d_in]."""
    n_dst, n_src = adj.shape
    d_in = h.shape[1]
    d_out = _round_up(w_self.shape[1], _LANE)

    tm, n_dst_pad = _choose(n_dst, tm_max, _SUBLANE_BF16)
    tk, n_src_pad = _choose(n_src, tk_max, _LANE)
    # h serves both the streamed src tiles and the dst-prefix tiles.
    n_src_pad = _round_up(max(n_src_pad, n_dst_pad), tk)
    grid = (n_dst_pad // tm, n_src_pad // tk)

    # Exact-mean split: 0/1 adjacency stays exact in bf16; 1/deg stays f32.
    deg = jnp.sum(adj.astype(jnp.float32), axis=1, keepdims=True)
    inv_deg = jnp.where(deg > 0, 1.0 / jnp.maximum(deg, 1.0), 0.0)
    inv_p = jnp.zeros((n_dst_pad, 1), jnp.float32).at[:n_dst].set(inv_deg)

    a_p = jnp.zeros((n_dst_pad, n_src_pad), jnp.bfloat16)
    a_p = a_p.at[:n_dst, :n_src].set(adj.astype(jnp.bfloat16))

    # Row-pad only (zero rows are exact: the matching A columns are zero);
    # feature width is left at its native size (no 128-lane inflation of x).
    h_p = _fit_rows(h, n_src_pad).astype(jnp.bfloat16)

    ws_p = jnp.zeros((d_in, d_out), jnp.bfloat16)
    ws_p = ws_p.at[:w_self.shape[0], :w_self.shape[1]].set(
        w_self.astype(jnp.bfloat16))
    wn_p = jnp.zeros((d_in, d_out), jnp.bfloat16)
    wn_p = wn_p.at[:w_neigh.shape[0], :w_neigh.shape[1]].set(
        w_neigh.astype(jnp.bfloat16))
    b2 = bias.reshape(1, -1)
    b_p = jnp.zeros((1, d_out), jnp.float32).at[:, :b2.shape[1]].set(b2)

    out_isz = jnp.dtype(out_dtype).itemsize
    # Explicit VMEM budget: 2x double-buffered streamed tiles + resident
    # weights/bias + f32 accumulator scratch (+ margin). Fits well under the
    # 64 MiB v7x ceiling at these tile sizes.
    stream_bytes = 2 * (tm * tk * 2          # A tile (bf16)
                        + tk * d_in * 2      # h_src tile
                        + tm * d_in * 2      # h_dst tile
                        + tm * _LANE * 4     # 1/deg tile (lane-padded)
                        + tm * d_out * out_isz)
    resident_bytes = 2 * (2 * d_in * d_out * 2 + d_out * 4)
    scratch_bytes = tm * d_in * 4
    vmem_limit = int(min(64 * 1024 * 1024,
                         stream_bytes + resident_bytes + scratch_bytes
                         + (4 << 20)))

    flops = 2 * n_dst_pad * n_src_pad * d_in + 2 * 2 * n_dst_pad * d_in * d_out
    bytes_accessed = (a_p.size * 2
                      + grid[0] * n_src_pad * d_in * 2    # src tiles re-read per dst tile
                      + n_dst_pad * d_in * 2
                      + inv_p.size * 4
                      + (ws_p.size + wn_p.size) * 2 + b_p.size * 4
                      + n_dst_pad * d_out * out_isz)

    kernel = functools.partial(_sage_layer_kernel, apply_relu=apply_relu)

    out = pl.pallas_call(
        kernel,
        out_shape=jax.ShapeDtypeStruct((n_dst_pad, d_out), out_dtype),
        grid=grid,
        in_specs=[
            pl.BlockSpec((tm, tk), lambda i, k: (i, k)),        # A (streamed)
            pl.BlockSpec((tm, 1), lambda i, k: (i, 0)),         # 1/deg
            pl.BlockSpec((tk, d_in), lambda i, k: (k, 0)),      # h_src (streamed)
            pl.BlockSpec((tm, d_in), lambda i, k: (i, 0)),      # h_dst prefix
            pl.BlockSpec((d_in, d_out), lambda i, k: (0, 0)),   # W_self (resident)
            pl.BlockSpec((d_in, d_out), lambda i, k: (0, 0)),   # W_neigh (resident)
            pl.BlockSpec((1, d_out), lambda i, k: (0, 0)),      # bias (resident)
        ],
        out_specs=pl.BlockSpec((tm, d_out), lambda i, k: (i, 0)),
        scratch_shapes=[pltpu.VMEM((tm, d_in), jnp.float32)],
        compiler_params=pltpu.CompilerParams(
            dimension_semantics=("parallel", "arbitrary"),
            vmem_limit_bytes=vmem_limit),
        cost_estimate=pl.CostEstimate(flops=int(flops), transcendentals=0,
                                      bytes_accessed=int(bytes_accessed)),
    )(a_p, inv_p, h_p, h_p, ws_p, wn_p, b_p)
    return out


def sage_forward(blocks, x, params):
    """Mini-batch GraphSAGE forward, mirroring SAGE.forward(blocks, x).

    blocks: list of dense 0/1 adjacency matrices [num_dst_l, num_src_l]
            (src nodes of block l == dst nodes of block l-1, MFG convention).
            # TODO(synk): real DGL blocks are sparse neighbor lists; an
            # index-gather (scalar-prefetch) aggregation would replace the
            # dense A @ h for production fan-out sampled graphs.
    x:      input features [num_src_0, in_feats]
    params: list of (w_self, w_neigh, bias) per layer.
    """
    n_layers = len(params)
    assert len(blocks) == n_layers
    tm_max, tk_max = _pick_tiles()

    h = x
    for l, (adj, (w_self, w_neigh, bias)) in enumerate(zip(blocks, params)):
        last = (l == n_layers - 1)
        h = _sage_layer(adj, h, w_self, w_neigh, bias,
                        apply_relu=not last,
                        out_dtype=jnp.float32 if last else jnp.bfloat16,
                        tm_max=tm_max, tk_max=tk_max)

    n_out = blocks[-1].shape[0]
    n_classes = params[-1][0].shape[1]
    return h[:n_out, :n_classes]


def _reference_forward(blocks, x, params):
    """Pure-JAX f32 reference (matches the PyTorch/DGL module semantics)."""
    h = x
    n_layers = len(params)
    for l, (adj, (w_self, w_neigh, bias)) in enumerate(zip(blocks, params)):
        n_dst = adj.shape[0]
        deg = jnp.maximum(adj.sum(axis=1, keepdims=True), 1.0)
        h_neigh = (adj / deg) @ h
        h = h[:n_dst] @ w_self + h_neigh @ w_neigh + bias
        if l != n_layers - 1:
            h = jnp.maximum(h, 0.0)
    return h


if __name__ == "__main__":
    key = jax.random.PRNGKey(0)

    in_feats, n_hidden, n_classes, n_layers = 32, 32, 8, 3
    # node counts per block: dst of block l == src of block l+1
    node_counts = [64, 48, 32, 16]   # src0, src1(=dst0), src2(=dst1), dst2

    keys = jax.random.split(key, 16)
    ki = iter(keys)

    # Deterministic parameter init (fc_self, fc_neigh: no bias; shared bias).
    dims = [(in_feats, n_hidden), (n_hidden, n_hidden), (n_hidden, n_classes)]
    params = []
    for d_in, d_out in dims:
        w_self = 0.1 * jax.random.normal(next(ki), (d_in, d_out), dtype=jnp.float32)
        w_neigh = 0.1 * jax.random.normal(next(ki), (d_in, d_out), dtype=jnp.float32)
        bias = 0.1 * jax.random.normal(next(ki), (1, d_out), dtype=jnp.float32)
        params.append((w_self, w_neigh, bias))

    # Mini-batch MFG blocks as dense 0/1 adjacency matrices.
    blocks = [
        jax.random.bernoulli(next(ki), p=0.3,
                             shape=(node_counts[l + 1], node_counts[l])
                             ).astype(jnp.float32)
        for l in range(n_layers)
    ]
    x = jax.random.normal(next(ki), (node_counts[0], in_feats), dtype=jnp.float32)

    fwd = jax.jit(sage_forward)
    out = jax.block_until_ready(fwd(blocks, x, params))

    ref = _reference_forward(blocks, x, params)
    assert out.shape == (node_counts[-1], n_classes), out.shape
    max_err = float(jnp.max(jnp.abs(out - ref)))
    assert jnp.allclose(out, ref, atol=2e-2, rtol=2e-2), max_err

    print("KERNEL_OK")
</pallas_src>

<mosaic_0001>
module attributes {stable_mosaic.version = 11 : i64} {
  func.func @_sage_layer_kernel(%arg0: i32, %arg1: i32, %arg2: memref<32x128xbf16, #tpu.memory_space<vmem>>, %arg3: memref<32x1xf32, #tpu.memory_space<vmem>>, %arg4: memref<128x128xbf16, #tpu.memory_space<vmem>>, %arg5: memref<32x128xbf16, #tpu.memory_space<vmem>>, %arg6: memref<128x128xbf16, #tpu.memory_space<vmem>>, %arg7: memref<128x128xbf16, #tpu.memory_space<vmem>>, %arg8: memref<1x128xf32, #tpu.memory_space<vmem>>, %arg9: memref<32x128xbf16, #tpu.memory_space<vmem>>, %arg10: memref<32x128xf32, #tpu.memory_space<vmem>>) attributes {dimension_semantics = [#tpu.dimension_semantics<parallel>, #tpu.dimension_semantics<arbitrary>], iteration_bounds = array<i64: 1, 1>, scalar_prefetch = 0 : i64, scratch_operands = 1 : i64, tpu.core_type = #tpu.core_type<tc>, window_params = [{transform_indices = @transform_0, window_bounds = array<i64: 32, 128>}, {transform_indices = @transform_1, window_bounds = array<i64: 32, 1>}, {transform_indices = @transform_2, window_bounds = array<i64: 128, 128>}, {transform_indices = @transform_3, window_bounds = array<i64: 32, 128>}, {pipeline_mode = #tpu.pipeline_mode<synchronous>, transform_indices = @transform_4, window_bounds = array<i64: 128, 128>}, {pipeline_mode = #tpu.pipeline_mode<synchronous>, transform_indices = @transform_5, window_bounds = array<i64: 128, 128>}, {pipeline_mode = #tpu.pipeline_mode<synchronous>, transform_indices = @transform_6, window_bounds = array<i64: 1, 128>}, {transform_indices = @transform_7, window_bounds = array<i64: 32, 128>}]} {
    %c0_i32 = arith.constant 0 : i32
    %0 = arith.cmpi eq, %arg1, %c0_i32 : i32
    %1 = arith.extui %0 : i1 to i32
    %c0_i32_0 = arith.constant 0 : i32
    %2 = arith.cmpi ne, %1, %c0_i32_0 : i32
    scf.if %2 {
      %cst_10 = arith.constant 0.000000e+00 : f32
      %12 = vector.broadcast %cst_10 : f32 to vector<32x128xf32>
      %c0_11 = arith.constant 0 : index
      %c0_12 = arith.constant 0 : index
      %13 = vector.load %arg10[%c0_11, %c0_12] : memref<32x128xf32, #tpu.memory_space<vmem>>, vector<32x128xf32>
      tpu.vector_store %arg10[%c0_11, %c0_12], %12 {strides = array<i32>} : memref<32x128xf32, #tpu.memory_space<vmem>>, vector<32x128xf32>,
    } else {
    }
    %c0 = arith.constant 0 : index
    %c0_1 = arith.constant 0 : index
    %3 = vector.load %arg10[%c0, %c0_1] : memref<32x128xf32, #tpu.memory_space<vmem>>, vector<32x128xf32>
    %c0_2 = arith.constant 0 : index
    %c0_3 = arith.constant 0 : index
    %4 = vector.load %arg2[%c0_2, %c0_3] : memref<32x128xbf16, #tpu.memory_space<vmem>>, vector<32x128xbf16>
    %c0_4 = arith.constant 0 : index
    %c0_5 = arith.constant 0 : index
    %5 = vector.load %arg4[%c0_4, %c0_5] : memref<128x128xbf16, #tpu.memory_space<vmem>>, vector<128x128xbf16>
    %cst = arith.constant dense<0.000000e+00> : vector<32x128xf32>
    %6 = tpu.matmul %4, %5, %cst {dimension_numbers = #tpu.dot_dimension_numbers<[1], [0], [0], [1], [0, 0, 1, 1], [], []>} : vector<32x128xbf16>, vector<128x128xbf16>, vector<32x128xf32> -> vector<32x128xf32>
    %7 = arith.addf %3, %6 : vector<32x128xf32>
    %c0_6 = arith.constant 0 : index
    %c0_7 = arith.constant 0 : index
    %8 = vector.load %arg10[%c0_6, %c0_7] : memref<32x128xf32, #tpu.memory_space<vmem>>, vector<32x128xf32>
    tpu.vector_store %arg10[%c0_6, %c0_7], %7 {strides = array<i32>} : memref<32x128xf32, #tpu.memory_space<vmem>>, vector<32x128xf32>,
    %c0_i32_8 = arith.constant 0 : i32
    %9 = arith.cmpi eq, %arg1, %c0_i32_8 : i32
    %10 = arith.extui %9 : i1 to i32
    %c0_i32_9 = arith.constant 0 : i32
    %11 = arith.cmpi ne, %10, %c0_i32_9 : i32
    scf.if %11 {
      %c0_10 = arith.constant 0 : index
      %c0_11 = arith.constant 0 : index
      %12 = vector.load %arg10[%c0_10, %c0_11] : memref<32x128xf32, #tpu.memory_space<vmem>>, vector<32x128xf32>
      %c0_12 = arith.constant 0 : index
      %c0_13 = arith.constant 0 : index
      %13 = vector.load %arg3[%c0_12, %c0_13] : memref<32x1xf32, #tpu.memory_space<vmem>>, vector<32x1xf32>
      %14 = vector.broadcast %13 : vector<32x1xf32> to vector<32x128xf32>
      %15 = arith.mulf %12, %14 : vector<32x128xf32>
      %c0_14 = arith.constant 0 : index
      %c0_15 = arith.constant 0 : index
      %16 = vector.load %arg5[%c0_14, %c0_15] : memref<32x128xbf16, #tpu.memory_space<vmem>>, vector<32x128xbf16>
      %c0_16 = arith.constant 0 : index
      %c0_17 = arith.constant 0 : index
      %17 = vector.load %arg6[%c0_16, %c0_17] : memref<128x128xbf16, #tpu.memory_space<vmem>>, vector<128x128xbf16>
      %cst_18 = arith.constant dense<0.000000e+00> : vector<32x128xf32>
      %18 = tpu.matmul %16, %17, %cst_18 {dimension_numbers = #tpu.dot_dimension_numbers<[1], [0], [0], [1], [0, 0, 1, 1], [], []>} : vector<32x128xbf16>, vector<128x128xbf16>, vector<32x128xf32> -> vector<32x128xf32>
      %19 = arith.truncf %15 : vector<32x128xf32> to vector<32x128xbf16>
      %c0_19 = arith.constant 0 : index
      %c0_20 = arith.constant 0 : index
      %20 = vector.load %arg7[%c0_19, %c0_20] : memref<128x128xbf16, #tpu.memory_space<vmem>>, vector<128x128xbf16>
      %cst_21 = arith.constant dense<0.000000e+00> : vector<32x128xf32>
      %21 = tpu.matmul %19, %20, %cst_21 {dimension_numbers = #tpu.dot_dimension_numbers<[1], [0], [0], [1], [0, 0, 1, 1], [], []>} : vector<32x128xbf16>, vector<128x128xbf16>, vector<32x128xf32> -> vector<32x128xf32>
      %22 = arith.addf %18, %21 : vector<32x128xf32>
      %c0_22 = arith.constant 0 : index
      %c0_23 = arith.constant 0 : index
      %23 = vector.load %arg8[%c0_22, %c0_23] : memref<1x128xf32, #tpu.memory_space<vmem>>, vector<1x128xf32>
      %24 = vector.broadcast %23 : vector<1x128xf32> to vector<32x128xf32>
      %25 = arith.addf %22, %24 : vector<32x128xf32>
      %cst_24 = arith.constant 0.000000e+00 : f32
      %26 = vector.broadcast %cst_24 : f32 to vector<32x128xf32>
      %27 = arith.maximumf %25, %26 : vector<32x128xf32>
      %28 = arith.truncf %27 : vector<32x128xf32> to vector<32x128xbf16>
      %c0_25 = arith.constant 0 : index
      %c0_26 = arith.constant 0 : index
      %29 = vector.load %arg9[%c0_25, %c0_26] : memref<32x128xbf16, #tpu.memory_space<vmem>>, vector<32x128xbf16>
      tpu.vector_store %arg9[%c0_25, %c0_26], %28 {strides = array<i32>} : memref<32x128xbf16, #tpu.memory_space<vmem>>, vector<32x128xbf16>,
    } else {
    }
    return
  }
  func.func @transform_0(%arg0: i32, %arg1: i32) -> (i32, i32) {
    %c0_i32 = arith.constant 0 : i32
    return %arg0, %arg1 : i32, i32
  }
  func.func @transform_1(%arg0: i32, %arg1: i32) -> (i32, i32) {
    %c0_i32 = arith.constant 0 : i32
    %c0_i32_0 = arith.constant 0 : i32
    return %arg0, %c0_i32 : i32, i32
  }
  func.func @transform_2(%arg0: i32, %arg1: i32) -> (i32, i32) {
    %c0_i32 = arith.constant 0 : i32
    %c0_i32_0 = arith.constant 0 : i32
    return %arg1, %c0_i32 : i32, i32
  }
  func.func @transform_3(%arg0: i32, %arg1: i32) -> (i32, i32) {
    %c0_i32 = arith.constant 0 : i32
    %c0_i32_0 = arith.constant 0 : i32
    return %arg0, %c0_i32 : i32, i32
  }
  func.func @transform_4(%arg0: i32, %arg1: i32) -> (i32, i32) {
    %c0_i32 = arith.constant 0 : i32
    %c0_i32_0 = arith.constant 0 : i32
    %c0_i32_1 = arith.constant 0 : i32
    return %c0_i32, %c0_i32_0 : i32, i32
  }
  func.func @transform_5(%arg0: i32, %arg1: i32) -> (i32, i32) {
    %c0_i32 = arith.constant 0 : i32
    %c0_i32_0 = arith.constant 0 : i32
    %c0_i32_1 = arith.constant 0 : i32
    return %c0_i32, %c0_i32_0 : i32, i32
  }
  func.func @transform_6(%arg0: i32, %arg1: i32) -> (i32, i32) {
    %c0_i32 = arith.constant 0 : i32
    %c0_i32_0 = arith.constant 0 : i32
    %c0_i32_1 = arith.constant 0 : i32
    return %c0_i32, %c0_i32_0 : i32, i32
  }
  func.func @transform_7(%arg0: i32, %arg1: i32) -> (i32, i32) {
    %c0_i32 = arith.constant 0 : i32
    %c0_i32_0 = arith.constant 0 : i32
    return %arg0, %c0_i32 : i32, i32
  }
}

module attributes {stable_mosaic.version = 11 : i64} {
  func.func @_sage_layer_kernel(%arg0: i32, %arg1: i32, %arg2: memref<48x128xbf16, #tpu.memory_space<vmem>>, %arg3: memref<48x1xf32, #tpu.memory_space<vmem>>, %arg4: memref<128x32xbf16, #tpu.memory_space<vmem>>, %arg5: memref<48x32xbf16, #tpu.memory_space<vmem>>, %arg6: memref<32x128xbf16, #tpu.memory_space<vmem>>, %arg7: memref<32x128xbf16, #tpu.memory_space<vmem>>, %arg8: memref<1x128xf32, #tpu.memory_space<vmem>>, %arg9: memref<48x128xbf16, #tpu.memory_space<vmem>>, %arg10: memref<48x32xf32, #tpu.memory_space<vmem>>) attributes {dimension_semantics = [#tpu.dimension_semantics<parallel>, #tpu.dimension_semantics<arbitrary>], iteration_bounds = array<i64: 1, 1>, scalar_prefetch = 0 : i64, scratch_operands = 1 : i64, tpu.core_type = #tpu.core_type<tc>, window_params = [{transform_indices = @transform_0, window_bounds = array<i64: 48, 128>}, {transform_indices = @transform_1, window_bounds = array<i64: 48, 1>}, {transform_indices = @transform_2, window_bounds = array<i64: 128, 32>}, {transform_indices = @transform_3, window_bounds = array<i64: 48, 32>}, {pipeline_mode = #tpu.pipeline_mode<synchronous>, transform_indices = @transform_4, window_bounds = array<i64: 32, 128>}, {pipeline_mode = #tpu.pipeline_mode<synchronous>, transform_indices = @transform_5, window_bounds = array<i64: 32, 128>}, {pipeline_mode = #tpu.pipeline_mode<synchronous>, transform_indices = @transform_6, window_bounds = array<i64: 1, 128>}, {transform_indices = @transform_7, window_bounds = array<i64: 48, 128>}]} {
    %c0_i32 = arith.constant 0 : i32
    %0 = arith.cmpi eq, %arg1, %c0_i32 : i32
    %1 = arith.extui %0 : i1 to i32
    %c0_i32_0 = arith.constant 0 : i32
    %2 = arith.cmpi ne, %1, %c0_i32_0 : i32
    scf.if %2 {
      %cst_10 = arith.constant 0.000000e+00 : f32
      %12 = vector.broadcast %cst_10 : f32 to vector<48x32xf32>
      %c0_11 = arith.constant 0 : index
      %c0_12 = arith.constant 0 : index
      %13 = vector.load %arg10[%c0_11, %c0_12] : memref<48x32xf32, #tpu.memory_space<vmem>>, vector<48x32xf32>
      tpu.vector_store %arg10[%c0_11, %c0_12], %12 {strides = array<i32>} : memref<48x32xf32, #tpu.memory_space<vmem>>, vector<48x32xf32>,
    } else {
    }
    %c0 = arith.constant 0 : index
    %c0_1 = arith.constant 0 : index
    %3 = vector.load %arg10[%c0, %c0_1] : memref<48x32xf32, #tpu.memory_space<vmem>>, vector<48x32xf32>
    %c0_2 = arith.constant 0 : index
    %c0_3 = arith.constant 0 : index
    %4 = vector.load %arg2[%c0_2, %c0_3] : memref<48x128xbf16, #tpu.memory_space<vmem>>, vector<48x128xbf16>
    %c0_4 = arith.constant 0 : index
    %c0_5 = arith.constant 0 : index
    %5 = vector.load %arg4[%c0_4, %c0_5] : memref<128x32xbf16, #tpu.memory_space<vmem>>, vector<128x32xbf16>
    %cst = arith.constant dense<0.000000e+00> : vector<48x32xf32>
    %6 = tpu.matmul %4, %5, %cst {dimension_numbers = #tpu.dot_dimension_numbers<[1], [0], [0], [1], [0, 0, 1, 1], [], []>} : vector<48x128xbf16>, vector<128x32xbf16>, vector<48x32xf32> -> vector<48x32xf32>
    %7 = arith.addf %3, %6 : vector<48x32xf32>
    %c0_6 = arith.constant 0 : index
    %c0_7 = arith.constant 0 : index
    %8 = vector.load %arg10[%c0_6, %c0_7] : memref<48x32xf32, #tpu.memory_space<vmem>>, vector<48x32xf32>
    tpu.vector_store %arg10[%c0_6, %c0_7], %7 {strides = array<i32>} : memref<48x32xf32, #tpu.memory_space<vmem>>, vector<48x32xf32>,
    %c0_i32_8 = arith.constant 0 : i32
    %9 = arith.cmpi eq, %arg1, %c0_i32_8 : i32
    %10 = arith.extui %9 : i1 to i32
    %c0_i32_9 = arith.constant 0 : i32
    %11 = arith.cmpi ne, %10, %c0_i32_9 : i32
    scf.if %11 {
      %c0_10 = arith.constant 0 : index
      %c0_11 = arith.constant 0 : index
      %12 = vector.load %arg10[%c0_10, %c0_11] : memref<48x32xf32, #tpu.memory_space<vmem>>, vector<48x32xf32>
      %c0_12 = arith.constant 0 : index
      %c0_13 = arith.constant 0 : index
      %13 = vector.load %arg3[%c0_12, %c0_13] : memref<48x1xf32, #tpu.memory_space<vmem>>, vector<48x1xf32>
      %14 = vector.broadcast %13 : vector<48x1xf32> to vector<48x32xf32>
      %15 = arith.mulf %12, %14 : vector<48x32xf32>
      %c0_14 = arith.constant 0 : index
      %c0_15 = arith.constant 0 : index
      %16 = vector.load %arg5[%c0_14, %c0_15] : memref<48x32xbf16, #tpu.memory_space<vmem>>, vector<48x32xbf16>
      %c0_16 = arith.constant 0 : index
      %c0_17 = arith.constant 0 : index
      %17 = vector.load %arg6[%c0_16, %c0_17] : memref<32x128xbf16, #tpu.memory_space<vmem>>, vector<32x128xbf16>
      %cst_18 = arith.constant dense<0.000000e+00> : vector<48x128xf32>
      %18 = tpu.matmul %16, %17, %cst_18 {dimension_numbers = #tpu.dot_dimension_numbers<[1], [0], [0], [1], [0, 0, 1, 1], [], []>} : vector<48x32xbf16>, vector<32x128xbf16>, vector<48x128xf32> -> vector<48x128xf32>
      %19 = arith.truncf %15 : vector<48x32xf32> to vector<48x32xbf16>
      %c0_19 = arith.constant 0 : index
      %c0_20 = arith.constant 0 : index
      %20 = vector.load %arg7[%c0_19, %c0_20] : memref<32x128xbf16, #tpu.memory_space<vmem>>, vector<32x128xbf16>
      %cst_21 = arith.constant dense<0.000000e+00> : vector<48x128xf32>
      %21 = tpu.matmul %19, %20, %cst_21 {dimension_numbers = #tpu.dot_dimension_numbers<[1], [0], [0], [1], [0, 0, 1, 1], [], []>} : vector<48x32xbf16>, vector<32x128xbf16>, vector<48x128xf32> -> vector<48x128xf32>
      %22 = arith.addf %18, %21 : vector<48x128xf32>
      %c0_22 = arith.constant 0 : index
      %c0_23 = arith.constant 0 : index
      %23 = vector.load %arg8[%c0_22, %c0_23] : memref<1x128xf32, #tpu.memory_space<vmem>>, vector<1x128xf32>
      %24 = vector.broadcast %23 : vector<1x128xf32> to vector<48x128xf32>
      %25 = arith.addf %22, %24 : vector<48x128xf32>
      %cst_24 = arith.constant 0.000000e+00 : f32
      %26 = vector.broadcast %cst_24 : f32 to vector<48x128xf32>
      %27 = arith.maximumf %25, %26 : vector<48x128xf32>
      %28 = arith.truncf %27 : vector<48x128xf32> to vector<48x128xbf16>
      %c0_25 = arith.constant 0 : index
      %c0_26 = arith.constant 0 : index
      %29 = vector.load %arg9[%c0_25, %c0_26] : memref<48x128xbf16, #tpu.memory_space<vmem>>, vector<48x128xbf16>
      tpu.vector_store %arg9[%c0_25, %c0_26], %28 {strides = array<i32>} : memref<48x128xbf16, #tpu.memory_space<vmem>>, vector<48x128xbf16>,
    } else {
    }
    return
  }
  func.func @transform_0(%arg0: i32, %arg1: i32) -> (i32, i32) {
    %c0_i32 = arith.constant 0 : i32
    return %arg0, %arg1 : i32, i32
  }
  func.func @transform_1(%arg0: i32, %arg1: i32) -> (i32, i32) {
    %c0_i32 = arith.constant 0 : i32
    %c0_i32_0 = arith.constant 0 : i32
    return %arg0, %c0_i32 : i32, i32
  }
  func.func @transform_2(%arg0: i32, %arg1: i32) -> (i32, i32) {
    %c0_i32 = arith.constant 0 : i32
    %c0_i32_0 = arith.constant 0 : i32
    return %arg1, %c0_i32 : i32, i32
  }
  func.func @transform_3(%arg0: i32, %arg1: i32) -> (i32, i32) {
    %c0_i32 = arith.constant 0 : i32
    %c0_i32_0 = arith.constant 0 : i32
    return %arg0, %c0_i32 : i32, i32
  }
  func.func @transform_4(%arg0: i32, %arg1: i32) -> (i32, i32) {
    %c0_i32 = arith.constant 0 : i32
    %c0_i32_0 = arith.constant 0 : i32
    %c0_i32_1 = arith.constant 0 : i32
    return %c0_i32, %c0_i32_0 : i32, i32
  }
  func.func @transform_5(%arg0: i32, %arg1: i32) -> (i32, i32) {
    %c0_i32 = arith.constant 0 : i32
    %c0_i32_0 = arith.constant 0 : i32
    %c0_i32_1 = arith.constant 0 : i32
    return %c0_i32, %c0_i32_0 : i32, i32
  }
  func.func @transform_6(%arg0: i32, %arg1: i32) -> (i32, i32) {
    %c0_i32 = arith.constant 0 : i32
    %c0_i32_0 = arith.constant 0 : i32
    %c0_i32_1 = arith.constant 0 : i32
    return %c0_i32, %c0_i32_0 : i32, i32
  }
  func.func @transform_7(%arg0: i32, %arg1: i32) -> (i32, i32) {
    %c0_i32 = arith.constant 0 : i32
    %c0_i32_0 = arith.constant 0 : i32
    return %arg0, %c0_i32 : i32, i32
  }
}

module attributes {stable_mosaic.version = 11 : i64} {
  func.func @_sage_layer_kernel(%arg0: i32, %arg1: i32, %arg2: memref<16x128xbf16, #tpu.memory_space<vmem>>, %arg3: memref<16x1xf32, #tpu.memory_space<vmem>>, %arg4: memref<128x128xbf16, #tpu.memory_space<vmem>>, %arg5: memref<16x128xbf16, #tpu.memory_space<vmem>>, %arg6: memref<128x128xbf16, #tpu.memory_space<vmem>>, %arg7: memref<128x128xbf16, #tpu.memory_space<vmem>>, %arg8: memref<1x128xf32, #tpu.memory_space<vmem>>, %arg9: memref<16x128xf32, #tpu.memory_space<vmem>>, %arg10: memref<16x128xf32, #tpu.memory_space<vmem>>) attributes {dimension_semantics = [#tpu.dimension_semantics<parallel>, #tpu.dimension_semantics<arbitrary>], iteration_bounds = array<i64: 1, 1>, scalar_prefetch = 0 : i64, scratch_operands = 1 : i64, tpu.core_type = #tpu.core_type<tc>, window_params = [{transform_indices = @transform_0, window_bounds = array<i64: 16, 128>}, {transform_indices = @transform_1, window_bounds = array<i64: 16, 1>}, {transform_indices = @transform_2, window_bounds = array<i64: 128, 128>}, {transform_indices = @transform_3, window_bounds = array<i64: 16, 128>}, {pipeline_mode = #tpu.pipeline_mode<synchronous>, transform_indices = @transform_4, window_bounds = array<i64: 128, 128>}, {pipeline_mode = #tpu.pipeline_mode<synchronous>, transform_indices = @transform_5, window_bounds = array<i64: 128, 128>}, {pipeline_mode = #tpu.pipeline_mode<synchronous>, transform_indices = @transform_6, window_bounds = array<i64: 1, 128>}, {transform_indices = @transform_7, window_bounds = array<i64: 16, 128>}]} {
    %c0_i32 = arith.constant 0 : i32
    %0 = arith.cmpi eq, %arg1, %c0_i32 : i32
    %1 = arith.extui %0 : i1 to i32
    %c0_i32_0 = arith.constant 0 : i32
    %2 = arith.cmpi ne, %1, %c0_i32_0 : i32
    scf.if %2 {
      %cst_10 = arith.constant 0.000000e+00 : f32
      %12 = vector.broadcast %cst_10 : f32 to vector<16x128xf32>
      %c0_11 = arith.constant 0 : index
      %c0_12 = arith.constant 0 : index
      %13 = vector.load %arg10[%c0_11, %c0_12] : memref<16x128xf32, #tpu.memory_space<vmem>>, vector<16x128xf32>
      tpu.vector_store %arg10[%c0_11, %c0_12], %12 {strides = array<i32>} : memref<16x128xf32, #tpu.memory_space<vmem>>, vector<16x128xf32>,
    } else {
    }
    %c0 = arith.constant 0 : index
    %c0_1 = arith.constant 0 : index
    %3 = vector.load %arg10[%c0, %c0_1] : memref<16x128xf32, #tpu.memory_space<vmem>>, vector<16x128xf32>
    %c0_2 = arith.constant 0 : index
    %c0_3 = arith.constant 0 : index
    %4 = vector.load %arg2[%c0_2, %c0_3] : memref<16x128xbf16, #tpu.memory_space<vmem>>, vector<16x128xbf16>
    %c0_4 = arith.constant 0 : index
    %c0_5 = arith.constant 0 : index
    %5 = vector.load %arg4[%c0_4, %c0_5] : memref<128x128xbf16, #tpu.memory_space<vmem>>, vector<128x128xbf16>
    %cst = arith.constant dense<0.000000e+00> : vector<16x128xf32>
    %6 = tpu.matmul %4, %5, %cst {dimension_numbers = #tpu.dot_dimension_numbers<[1], [0], [0], [1], [0, 0, 1, 1], [], []>} : vector<16x128xbf16>, vector<128x128xbf16>, vector<16x128xf32> -> vector<16x128xf32>
    %7 = arith.addf %3, %6 : vector<16x128xf32>
    %c0_6 = arith.constant 0 : index
    %c0_7 = arith.constant 0 : index
    %8 = vector.load %arg10[%c0_6, %c0_7] : memref<16x128xf32, #tpu.memory_space<vmem>>, vector<16x128xf32>
    tpu.vector_store %arg10[%c0_6, %c0_7], %7 {strides = array<i32>} : memref<16x128xf32, #tpu.memory_space<vmem>>, vector<16x128xf32>,
    %c0_i32_8 = arith.constant 0 : i32
    %9 = arith.cmpi eq, %arg1, %c0_i32_8 : i32
    %10 = arith.extui %9 : i1 to i32
    %c0_i32_9 = arith.constant 0 : i32
    %11 = arith.cmpi ne, %10, %c0_i32_9 : i32
    scf.if %11 {
      %c0_10 = arith.constant 0 : index
      %c0_11 = arith.constant 0 : index
      %12 = vector.load %arg10[%c0_10, %c0_11] : memref<16x128xf32, #tpu.memory_space<vmem>>, vector<16x128xf32>
      %c0_12 = arith.constant 0 : index
      %c0_13 = arith.constant 0 : index
      %13 = vector.load %arg3[%c0_12, %c0_13] : memref<16x1xf32, #tpu.memory_space<vmem>>, vector<16x1xf32>
      %14 = vector.broadcast %13 : vector<16x1xf32> to vector<16x128xf32>
      %15 = arith.mulf %12, %14 : vector<16x128xf32>
      %c0_14 = arith.constant 0 : index
      %c0_15 = arith.constant 0 : index
      %16 = vector.load %arg5[%c0_14, %c0_15] : memref<16x128xbf16, #tpu.memory_space<vmem>>, vector<16x128xbf16>
      %c0_16 = arith.constant 0 : index
      %c0_17 = arith.constant 0 : index
      %17 = vector.load %arg6[%c0_16, %c0_17] : memref<128x128xbf16, #tpu.memory_space<vmem>>, vector<128x128xbf16>
      %cst_18 = arith.constant dense<0.000000e+00> : vector<16x128xf32>
      %18 = tpu.matmul %16, %17, %cst_18 {dimension_numbers = #tpu.dot_dimension_numbers<[1], [0], [0], [1], [0, 0, 1, 1], [], []>} : vector<16x128xbf16>, vector<128x128xbf16>, vector<16x128xf32> -> vector<16x128xf32>
      %19 = arith.truncf %15 : vector<16x128xf32> to vector<16x128xbf16>
      %c0_19 = arith.constant 0 : index
      %c0_20 = arith.constant 0 : index
      %20 = vector.load %arg7[%c0_19, %c0_20] : memref<128x128xbf16, #tpu.memory_space<vmem>>, vector<128x128xbf16>
      %cst_21 = arith.constant dense<0.000000e+00> : vector<16x128xf32>
      %21 = tpu.matmul %19, %20, %cst_21 {dimension_numbers = #tpu.dot_dimension_numbers<[1], [0], [0], [1], [0, 0, 1, 1], [], []>} : vector<16x128xbf16>, vector<128x128xbf16>, vector<16x128xf32> -> vector<16x128xf32>
      %22 = arith.addf %18, %21 : vector<16x128xf32>
      %c0_22 = arith.constant 0 : index
      %c0_23 = arith.constant 0 : index
      %23 = vector.load %arg8[%c0_22, %c0_23] : memref<1x128xf32, #tpu.memory_space<vmem>>, vector<1x128xf32>
      %24 = vector.broadcast %23 : vector<1x128xf32> to vector<16x128xf32>
      %25 = arith.addf %22, %24 : vector<16x128xf32>
      %c0_24 = arith.constant 0 : index
      %c0_25 = arith.constant 0 : index
      %26 = vector.load %arg9[%c0_24, %c0_25] : memref<16x128xf32, #tpu.memory_space<vmem>>, vector<16x128xf32>
      tpu.vector_store %arg9[%c0_24, %c0_25], %25 {strides = array<i32>} : memref<16x128xf32, #tpu.memory_space<vmem>>, vector<16x128xf32>,
    } else {
    }
    return
  }
  func.func @transform_0(%arg0: i32, %arg1: i32) -> (i32, i32) {
    %c0_i32 = arith.constant 0 : i32
    return %arg0, %arg1 : i32, i32
  }
  func.func @transform_1(%arg0: i32, %arg1: i32) -> (i32, i32) {
    %c0_i32 = arith.constant 0 : i32
    %c0_i32_0 = arith.constant 0 : i32
    return %arg0, %c0_i32 : i32, i32
  }
  func.func @transform_2(%arg0: i32, %arg1: i32) -> (i32, i32) {
    %c0_i32 = arith.constant 0 : i32
    %c0_i32_0 = arith.constant 0 : i32
    return %arg1, %c0_i32 : i32, i32
  }
  func.func @transform_3(%arg0: i32, %arg1: i32) -> (i32, i32) {
    %c0_i32 = arith.constant 0 : i32
    %c0_i32_0 = arith.constant 0 : i32
    return %arg0, %c0_i32 : i32, i32
  }
  func.func @transform_4(%arg0: i32, %arg1: i32) -> (i32, i32) {
    %c0_i32 = arith.constant 0 : i32
    %c0_i32_0 = arith.constant 0 : i32
    %c0_i32_1 = arith.constant 0 : i32
    return %c0_i32, %c0_i32_0 : i32, i32
  }
  func.func @transform_5(%arg0: i32, %arg1: i32) -> (i32, i32) {
    %c0_i32 = arith.constant 0 : i32
    %c0_i32_0 = arith.constant 0 : i32
    %c0_i32_1 = arith.constant 0 : i32
    return %c0_i32, %c0_i32_0 : i32, i32
  }
  func.func @transform_6(%arg0: i32, %arg1: i32) -> (i32, i32) {
    %c0_i32 = arith.constant 0 : i32
    %c0_i32_0 = arith.constant 0 : i32
    %c0_i32_1 = arith.constant 0 : i32
    return %c0_i32, %c0_i32_0 : i32, i32
  }
  func.func @transform_7(%arg0: i32, %arg1: i32) -> (i32, i32) {
    %c0_i32 = arith.constant 0 : i32
    %c0_i32_0 = arith.constant 0 : i32
    return %arg0, %c0_i32 : i32, i32
  }
}

</mosaic_0001>

<llo_original>
// kernel: sage_forward.3
$region0: #{sage_forward.3}
  #allocation0 [shape = 'u32[]', space=smem, size = 0x4, offset = 0x4, fixed_abs, tag = 'smem constant byte address 0x4 - core index']
  #allocation1 [shape = 'u32[72,128]{1,0:T(1,128)}', space=vmem, size = 0x9000, scoped, tag = 'internal scratch']
  #allocation2 [shape = 'f32[48,32]{1,0:T(8,128)}', space=vmem, size = 0x6000, scoped, tag = 'scratch operand']
  %s0 = inlined_call_operand.vmem [shape: bf16[48,128], index: 0, kind: input, shape index: {}]
  %s1 = inlined_call_operand.vmem [shape: f32[48,1], index: 1, kind: input, shape index: {}]
  %s2 = inlined_call_operand.vmem [shape: bf16[128,32], index: 2, kind: input, shape index: {}, may-alias: {2,3}]
  %s3 = inlined_call_operand.vmem [shape: bf16[128,32], index: 3, kind: input, shape index: {}, may-alias: {2,3}]
  %s4 = inlined_call_operand.vmem [shape: bf16[32,128], index: 4, kind: input, shape index: {}]
  %s5 = inlined_call_operand.vmem [shape: bf16[32,128], index: 5, kind: input, shape index: {}]
  %s6 = inlined_call_operand.vmem [shape: f32[1,128], index: 6, kind: input, shape index: {}]
  %s7 = inlined_call_operand.vmem [shape: bf16[48,128], index: 7, kind: output, shape index: {}]
  %s8 = sld [smem:[#allocation0]]
  $region46: #{sage_forward.3} parent=0
    _
  %s10 = ssub.s32 1, %s8
  %s11 = scalar_select 0, %s10, %s8
  // Predicated region
  $region2: #{sage_forward.3} parent=0 // pred_check
    _
  $region3: #{sage_forward.3} parent=0 // pred_check_branch
    %13 = sbr.rel (0) target = $region5
  $region4: #{sage_forward.3} parent=0 // pred_region
    _
  $region5: #{sage_forward.3} parent=0 // pred_fallthru
    _
  // Predicated region
  $region6: #{sage_forward.3} parent=0 // pred_check
    _
  $region7: #{sage_forward.3} parent=0 // pred_check_branch
    %15 = sbr.rel (0) target = $region9
  $region8: #{sage_forward.3} parent=0 // pred_region
    _
  $region9: #{sage_forward.3} parent=0 // pred_fallthru
    _
  // Predicated region
  $region10: #{sage_forward.3} parent=0 // pred_check
    _
  $region11: #{sage_forward.3} parent=0 // pred_check_branch
    %17 = sbr.rel (0) target = $region13
  $region12: #{sage_forward.3} parent=0 // pred_region
    _
  $region13: #{sage_forward.3} parent=0 // pred_fallthru
    _
  // Predicated region
  $region14: #{sage_forward.3} parent=0 // pred_check
    _
  $region15: #{sage_forward.3} parent=0 // pred_check_branch
    %19 = sbr.rel (0) target = $region17
  $region16: #{sage_forward.3} parent=0 // pred_region
    _
  $region17: #{sage_forward.3} parent=0 // pred_fallthru
    _
  // Predicated region
  $region18: #{sage_forward.3} parent=0 // pred_check
    _
  $region19: #{sage_forward.3} parent=0 // pred_check_branch
    %21 = sbr.rel (0) target = $region21
  $region20: #{sage_forward.3} parent=0 // pred_region
    _
  $region21: #{sage_forward.3} parent=0 // pred_fallthru
    _
  // Predicated region
  $region22: #{sage_forward.3} parent=0 // pred_check
    _
  $region23: #{sage_forward.3} parent=0 // pred_check_branch
    %23 = sbr.rel (0) target = $region25
  $region24: #{sage_forward.3} parent=0 // pred_region
    _
  $region25: #{sage_forward.3} parent=0 // pred_fallthru
    _
  // Predicated region
  $region26: #{sage_forward.3} parent=0 // pred_check
    _
  $region27: #{sage_forward.3} parent=0 // pred_check_branch
    %25 = sbr.rel (0) target = $region29
  $region28: #{sage_forward.3} parent=0 // pred_region
    _
  $region29: #{sage_forward.3} parent=0 // pred_fallthru
    _
  %p27 = scmp.eq.s32.totalorder 0, 0
  // Predicated region
  $region30: #{sage_forward.3} parent=0 // pred_check
    %p28 = pneg %p27
  $region31: #{sage_forward.3} parent=0 // pred_check_branch
    %30 = sbr.rel (%p28) target = $region33
  $region32: #{sage_forward.3} parent=0 // pred_region
    %vm31 = vcmask 261120
    %32 = vst.msk [vmem:[#allocation2] sm:$0xff] %vm31, 0.0
    %33 = vst.msk [vmem:[#allocation2 + $0x8] sm:$0xff] %vm31, 0.0
    %34 = vst.msk [vmem:[#allocation2 + $0x10] sm:$0xff] %vm31, 0.0
    %35 = vst.msk [vmem:[#allocation2 + $0x18] sm:$0xff] %vm31, 0.0
    %36 = vst.msk [vmem:[#allocation2 + $0x20] sm:$0xff] %vm31, 0.0
    %37 = vst.msk [vmem:[#allocation2 + $0x28] sm:$0xff] %vm31, 0.0
  $region33: #{sage_forward.3} parent=0 // pred_fallthru
    _
  %v38 = vld [vmem:[#allocation2] sm:$0xff]
  %v39 = vld [vmem:[#allocation2 + $0x8] sm:$0xff]
  %v40 = vld [vmem:[#allocation2 + $0x10] sm:$0xff]
  %v41 = vld [vmem:[#allocation2 + $0x18] sm:$0xff]
  %v42 = vld [vmem:[#allocation2 + $0x20] sm:$0xff]
  %v43 = vld [vmem:[#allocation2 + $0x28] sm:$0xff]
  %v44 = vld [vmem:[%s0] sm:$0xf]
  %v45 = vld [vmem:[%s0 + $0x4] sm:$0xf]
  %v46 = vld [vmem:[%s0 + $0x8] sm:$0xf]
  %v47 = vld [vmem:[%s0 + $0xc] sm:$0xf]
  %v48 = vld [vmem:[%s0 + $0x10] sm:$0xf]
  %v49 = vld [vmem:[%s0 + $0x14] sm:$0xf]
  %v50 = vld [vmem:[%s2] sm:$0xf]
  %v51 = vld [vmem:[%s2 + $0x4] sm:$0xf]
  %v52 = vld [vmem:[%s2 + $0x8] sm:$0xf]
  %v53 = vld [vmem:[%s2 + $0xc] sm:$0xf]
  %v54 = vld [vmem:[%s2 + $0x10] sm:$0xf]
  %v55 = vld [vmem:[%s2 + $0x14] sm:$0xf]
  %v56 = vld [vmem:[%s2 + $0x18] sm:$0xf]
  %v57 = vld [vmem:[%s2 + $0x1c] sm:$0xf]
  %v58 = vld [vmem:[%s2 + $0x20] sm:$0xf]
  %v59 = vld [vmem:[%s2 + $0x24] sm:$0xf]
  %v60 = vld [vmem:[%s2 + $0x28] sm:$0xf]
  %v61 = vld [vmem:[%s2 + $0x2c] sm:$0xf]
  %v62 = vld [vmem:[%s2 + $0x30] sm:$0xf]
  %v63 = vld [vmem:[%s2 + $0x34] sm:$0xf]
  %v64 = vld [vmem:[%s2 + $0x38] sm:$0xf]
  %v65 = vld [vmem:[%s2 + $0x3c] sm:$0xf]
  %v72 = vunpack.c.l.b16 %v44
  %v73 = vunpack.c.l.b16 %v45
  %v74 = vunpack.c.l.b16 %v46
  %v75 = vunpack.c.l.b16 %v47
  %v76 = vunpack.c.l.b16 %v48
  %v77 = vunpack.c.l.b16 %v49
  %v78 = vpack.c.b16 %v73, %v72
  %v79 = vpack.c.b16 %v75, %v74
  %v80 = vpack.c.b16 %v77, %v76
  %v100 = vunpack.c.l.b16 %v50
  %v101 = vunpack.c.l.b16 %v51
  %v102 = vunpack.c.l.b16 %v52
  %v103 = vunpack.c.l.b16 %v53
  %v104 = vunpack.c.l.b16 %v54
  %v105 = vunpack.c.l.b16 %v55
  %v106 = vunpack.c.l.b16 %v56
  %v107 = vunpack.c.l.b16 %v57
  %v108 = vunpack.c.l.b16 %v58
  %v109 = vunpack.c.l.b16 %v59
  %v110 = vunpack.c.l.b16 %v60
  %v111 = vunpack.c.l.b16 %v61
  %v112 = vunpack.c.l.b16 %v62
  %v113 = vunpack.c.l.b16 %v63
  %v114 = vunpack.c.l.b16 %v64
  %v115 = vunpack.c.l.b16 %v65
  %v116 = vpack.c.b16 %v101, %v100
  %v117 = vpack.c.b16 %v103, %v102
  %v118 = vpack.c.b16 %v105, %v104
  %v119 = vpack.c.b16 %v107, %v106
  %v120 = vpack.c.b16 %v109, %v108
  %v121 = vpack.c.b16 %v111, %v110
  %v122 = vpack.c.b16 %v113, %v112
  %v123 = vpack.c.b16 %v115, %v114
  %132 = vmatpush.bf16.msra.mxu0 %v123
  %133 = vmatpush.bf16.msra.mxu0 %v122
  %134 = vmatpush.bf16.msra.mxu0 %v121
  %135 = vmatpush.bf16.msra.mxu0 %v120
  %136 = vmatpush.bf16.msra.mxu0 %v119
  %137 = vmatpush.bf16.msra.mxu0 %v118
  %138 = vmatpush.bf16.msra.mxu0 %v117
  %139 = vmatpush.bf16.msra.mxu0 %v116
  %140 = vmatmul.bf16.gmra.mxu0 %v78
  %v141 = vpop.f32.mrf.mxu0
  %v142 = vadd.f32 0.0, %v141
  %v143 = vpop.f32.mrf.mxu0
  %v144 = vadd.f32 0.0, %v143
  %145 = vmatmul.bf16.gmra.mxu0 %v79
  %v146 = vpop.f32.mrf.mxu0
  %v147 = vadd.f32 0.0, %v146
  %v148 = vpop.f32.mrf.mxu0
  %v149 = vadd.f32 0.0, %v148
  %150 = vmatmul.bf16.gmra.mxu0 %v80
  %v151 = vpop.f32.mrf.mxu0
  %v152 = vadd.f32 0.0, %v151
  %v153 = vpop.f32.mrf.mxu0
  %v154 = vadd.f32 0.0, %v153
  %155 = vdwg.mxu0
  %v156 = vadd.f32 %v38, %v142
  %v157 = vadd.f32 %v39, %v144
  %v158 = vadd.f32 %v40, %v147
  %v159 = vadd.f32 %v41, %v149
  %v160 = vadd.f32 %v42, %v152
  %v161 = vadd.f32 %v43, %v154
  %vm162 = vcmask 261120
  %163 = vst.msk [vmem:[#allocation2] sm:$0xff] %vm162, %v156
  %164 = vst.msk [vmem:[#allocation2 + $0x8] sm:$0xff] %vm162, %v157
  %165 = vst.msk [vmem:[#allocation2 + $0x10] sm:$0xff] %vm162, %v158
  %166 = vst.msk [vmem:[#allocation2 + $0x18] sm:$0xff] %vm162, %v159
  %167 = vst.msk [vmem:[#allocation2 + $0x20] sm:$0xff] %vm162, %v160
  %168 = vst.msk [vmem:[#allocation2 + $0x28] sm:$0xff] %vm162, %v161
  // Predicated region
  $region34: #{sage_forward.3} parent=0 // pred_check
    %p169 = pneg %p27
  $region35: #{sage_forward.3} parent=0 // pred_check_branch
    %171 = sbr.rel (%p169) target = $region37
  $region36: #{sage_forward.3} parent=0 // pred_region
    %v172 = vld [vmem:[#allocation2] sm:$0xff]
    %v173 = vld [vmem:[#allocation2 + $0x8] sm:$0xff]
    %v174 = vld [vmem:[#allocation2 + $0x10] sm:$0xff]
    %v175 = vld [vmem:[#allocation2 + $0x18] sm:$0xff]
    %v176 = vld [vmem:[#allocation2 + $0x20] sm:$0xff]
    %v177 = vld [vmem:[#allocation2 + $0x28] sm:$0xff]
    %v178 = vld [vmem:[%s1] sm:$0xff]
    %v179 = vld [vmem:[%s1 + $0x8] sm:$0xff]
    %v180 = vld [vmem:[%s1 + $0x10] sm:$0xff]
    %v181 = vld [vmem:[%s1 + $0x18] sm:$0xff]
    %v182 = vld [vmem:[%s1 + $0x20] sm:$0xff]
    %v183 = vld [vmem:[%s1 + $0x28] sm:$0xff]
    %185 = vset.pattern.permute.xlu0 0
    %186 = vperm.xlu0 %185, %v178
    %v187 = vpop.permute.xlu0 %186
    %190 = vset.pattern.permute.xlu0 0
    %191 = vperm.xlu0 %190, %v179
    %v192 = vpop.permute.xlu0 %191
    %195 = vset.pattern.permute.xlu0 0
    %196 = vperm.xlu0 %195, %v180
    %v197 = vpop.permute.xlu0 %196
    %200 = vset.pattern.permute.xlu0 0
    %201 = vperm.xlu0 %200, %v181
    %v202 = vpop.permute.xlu0 %201
    %205 = vset.pattern.permute.xlu0 0
    %206 = vperm.xlu0 %205, %v182
    %v207 = vpop.permute.xlu0 %206
    %210 = vset.pattern.permute.xlu0 0
    %211 = vperm.xlu0 %210, %v183
    %v212 = vpop.permute.xlu0 %211
    %v214 = vmul.f32 %v172, %v187
    %v215 = vmul.f32 %v173, %v192
    %v216 = vmul.f32 %v174, %v197
    %v217 = vmul.f32 %v175, %v202
    %v218 = vmul.f32 %v176, %v207
    %v219 = vmul.f32 %v177, %v212
    %v220 = vld [vmem:[%s3] sm:$0xf]
    %v221 = vld [vmem:[%s3 + $0x4] sm:$0xf]
    %v222 = vld [vmem:[%s3 + $0x8] sm:$0xf]
    %v223 = vld [vmem:[%s3 + $0xc] sm:$0xf]
    %v224 = vld [vmem:[%s3 + $0x10] sm:$0xf]
    %v225 = vld [vmem:[%s3 + $0x14] sm:$0xf]
    %v226 = vld [vmem:[%s4] sm:$0xf]
    %v227 = vld [vmem:[%s4 + $0x4] sm:$0xf]
    %v228 = vld [vmem:[%s4 + $0x8] sm:$0xf]
    %v229 = vld [vmem:[%s4 + $0xc] sm:$0xf]
    %v230 = vpack.c.bf16 %v215, %v214
    %v231 = vpack.c.bf16 %v217, %v216
    %v232 = vpack.c.bf16 %v219, %v218
    %v233 = vld [vmem:[%s5] sm:$0xf]
    %v234 = vld [vmem:[%s5 + $0x4] sm:$0xf]
    %v235 = vld [vmem:[%s5 + $0x8] sm:$0xf]
    %v236 = vld [vmem:[%s5 + $0xc] sm:$0xf]
    %v241 = vunpack.c.l.b16 %v233
    %v242 = vunpack.c.l.b16 %v234
    %v243 = vunpack.c.l.b16 %v235
    %v244 = vunpack.c.l.b16 %v236
    %v245 = vpack.c.b16 %v242, %v241
    %v246 = vpack.c.b16 %v244, %v243
    %v250 = vsel %vm162, %v230, 0
    %v253 = vsel %vm162, %v231, 0
    %v256 = vsel %vm162, %v232, 0
    %258 = vmatpush.bf16.msra.mxu0 0
    %259 = vmatpush.bf16.msra.mxu0 0
    %260 = vmatpush.bf16.msra.mxu0 0
    %261 = vmatpush.bf16.msra.mxu0 0
    %262 = vmatpush.bf16.msra.mxu0 0
    %263 = vmatpush.bf16.msra.mxu0 0
    %264 = vmatpush.bf16.msra.mxu0 %v246
    %265 = vmatpush.bf16.msra.mxu0 %v245
    %266 = vmatmul.bf16.gmra.mxu0 %v250
    %v267 = vpop.f32.mrf.mxu0
    %v268 = vadd.f32 0.0, %v267
    %v269 = vpop.f32.mrf.mxu0
    %v270 = vadd.f32 0.0, %v269
    %271 = vmatmul.bf16.gmra.mxu0 %v253
    %v272 = vpop.f32.mrf.mxu0
    %v273 = vadd.f32 0.0, %v272
    %v274 = vpop.f32.mrf.mxu0
    %v275 = vadd.f32 0.0, %v274
    %276 = vmatmul.bf16.gmra.mxu0 %v256
    %v277 = vpop.f32.mrf.mxu0
    %v278 = vadd.f32 0.0, %v277
    %v279 = vpop.f32.mrf.mxu0
    %v280 = vadd.f32 0.0, %v279
    %281 = vdwg.mxu0
    %v288 = vunpack.c.l.b16 %v220
    %v289 = vunpack.c.l.b16 %v221
    %v290 = vunpack.c.l.b16 %v222
    %v291 = vunpack.c.l.b16 %v223
    %v292 = vunpack.c.l.b16 %v224
    %v293 = vunpack.c.l.b16 %v225
    %v294 = vpack.c.b16 %v289, %v288
    %v295 = vpack.c.b16 %v291, %v290
    %v296 = vpack.c.b16 %v293, %v292
    %v301 = vunpack.c.l.b16 %v226
    %v302 = vunpack.c.l.b16 %v227
    %v303 = vunpack.c.l.b16 %v228
    %v304 = vunpack.c.l.b16 %v229
    %v305 = vpack.c.b16 %v302, %v301
    %v306 = vpack.c.b16 %v304, %v303
    %v310 = vsel %vm162, %v294, 0
    %v313 = vsel %vm162, %v295, 0
    %v316 = vsel %vm162, %v296, 0
    %318 = vmatpush.bf16.msra.mxu0 0
    %319 = vmatpush.bf16.msra.mxu0 0
    %320 = vmatpush.bf16.msra.mxu0 0
    %321 = vmatpush.bf16.msra.mxu0 0
    %322 = vmatpush.bf16.msra.mxu0 0
    %323 = vmatpush.bf16.msra.mxu0 0
    %324 = vmatpush.bf16.msra.mxu0 %v306
    %325 = vmatpush.bf16.msra.mxu0 %v305
    %326 = vmatmul.bf16.gmra.mxu0 %v310
    %v327 = vpop.f32.mrf.mxu0
    %v328 = vadd.f32 %v268, %v327
    %v329 = vpop.f32.mrf.mxu0
    %v330 = vadd.f32 %v270, %v329
    %331 = vmatmul.bf16.gmra.mxu0 %v313
    %v332 = vpop.f32.mrf.mxu0
    %v333 = vadd.f32 %v273, %v332
    %v334 = vpop.f32.mrf.mxu0
    %v335 = vadd.f32 %v275, %v334
    %336 = vmatmul.bf16.gmra.mxu0 %v316
    %v337 = vpop.f32.mrf.mxu0
    %v338 = vadd.f32 %v278, %v337
    %v339 = vpop.f32.mrf.mxu0
    %v340 = vadd.f32 %v280, %v339
    %341 = vdwg.mxu0
    %v342 = vld [vmem:[%s6] sm:$0x1]
    %v344 = vperm.slane %v342, 0
    %v346 = vadd.f32 %v328, %v344
    %v347 = vadd.f32 %v330, %v344
    %v348 = vadd.f32 %v333, %v344
    %v349 = vadd.f32 %v335, %v344
    %v350 = vadd.f32 %v338, %v344
    %v351 = vadd.f32 %v340, %v344
    %v352 = vmax.f32 %v346, 0.0
    %v353 = vmax.f32 %v347, 0.0
    %v354 = vmax.f32 %v348, 0.0
    %v355 = vmax.f32 %v349, 0.0
    %v356 = vmax.f32 %v350, 0.0
    %v357 = vmax.f32 %v351, 0.0
    %v358 = vpack.c.bf16 %v352, %v352
    %v359 = vpack.c.bf16 %v353, %v353
    %v360 = vpack.c.bf16 %v354, %v354
    %v361 = vpack.c.bf16 %v355, %v355
    %v362 = vpack.c.bf16 %v356, %v356
    %v363 = vpack.c.bf16 %v357, %v357
    %364 = vst [vmem:[%s7] sm:$0xf] %v358
    %365 = vst [vmem:[%s7 + $0x4] sm:$0xf] %v359
    %366 = vst [vmem:[%s7 + $0x8] sm:$0xf] %v360
    %367 = vst [vmem:[%s7 + $0xc] sm:$0xf] %v361
    %368 = vst [vmem:[%s7 + $0x10] sm:$0xf] %v362
    %369 = vst [vmem:[%s7 + $0x14] sm:$0xf] %v363
  $region37: #{sage_forward.3} parent=0 // pred_fallthru
    _
  // Predicated region
  $region38: #{sage_forward.3} parent=0 // pred_check
    _
  $region39: #{sage_forward.3} parent=0 // pred_check_branch
    %371 = sbr.rel (0) target = $region41
  $region40: #{sage_forward.3} parent=0 // pred_region
    _
  $region41: #{sage_forward.3} parent=0 // pred_fallthru
    _
  // Predicated region
  $region42: #{sage_forward.3} parent=0 // pred_check
    _
  $region43: #{sage_forward.3} parent=0 // pred_check_branch
    %373 = sbr.rel (0) target = $region45
  $region44: #{sage_forward.3} parent=0 // pred_region
    _
  $region45: #{sage_forward.3} parent=0 // pred_fallthru
    _

// kernel: sage_forward.4
$region0: #{sage_forward.4}
  #allocation0 [shape = 'u32[]', space=smem, size = 0x4, offset = 0x4, fixed_abs, tag = 'smem constant byte address 0x4 - core index']
  #allocation1 [shape = 'u32[72,128]{1,0:T(1,128)}', space=vmem, size = 0x9000, scoped, tag = 'internal scratch']
  #allocation2 [shape = 'f32[32,128]{1,0:T(8,128)}', space=vmem, size = 0x4000, scoped, tag = 'scratch operand']
  %s0 = inlined_call_operand.vmem [shape: bf16[32,128], index: 0, kind: input, shape index: {}]
  %s1 = inlined_call_operand.vmem [shape: f32[32,1], index: 1, kind: input, shape index: {}]
  %s2 = inlined_call_operand.vmem [shape: bf16[128,128], index: 2, kind: input, shape index: {}, may-alias: {2,3}]
  %s3 = inlined_call_operand.vmem [shape: bf16[128,128], index: 3, kind: input, shape index: {}, may-alias: {2,3}]
  %s4 = inlined_call_operand.vmem [shape: bf16[128,128], index: 4, kind: input, shape index: {}]
  %s5 = inlined_call_operand.vmem [shape: bf16[128,128], index: 5, kind: input, shape index: {}]
  %s6 = inlined_call_operand.vmem [shape: f32[1,128], index: 6, kind: input, shape index: {}]
  %s7 = inlined_call_operand.vmem [shape: bf16[32,128], index: 7, kind: output, shape index: {}]
  %s8 = sld [smem:[#allocation0]]
  $region46: #{sage_forward.4} parent=0
    _
  %s10 = ssub.s32 1, %s8
  %s11 = scalar_select 0, %s10, %s8
  // Predicated region
  $region2: #{sage_forward.4} parent=0 // pred_check
    _
  $region3: #{sage_forward.4} parent=0 // pred_check_branch
    %13 = sbr.rel (0) target = $region5
  $region4: #{sage_forward.4} parent=0 // pred_region
    _
  $region5: #{sage_forward.4} parent=0 // pred_fallthru
    _
  // Predicated region
  $region6: #{sage_forward.4} parent=0 // pred_check
    _
  $region7: #{sage_forward.4} parent=0 // pred_check_branch
    %15 = sbr.rel (0) target = $region9
  $region8: #{sage_forward.4} parent=0 // pred_region
    _
  $region9: #{sage_forward.4} parent=0 // pred_fallthru
    _
  // Predicated region
  $region10: #{sage_forward.4} parent=0 // pred_check
    _
  $region11: #{sage_forward.4} parent=0 // pred_check_branch
    %17 = sbr.rel (0) target = $region13
  $region12: #{sage_forward.4} parent=0 // pred_region
    _
  $region13: #{sage_forward.4} parent=0 // pred_fallthru
    _
  // Predicated region
  $region14: #{sage_forward.4} parent=0 // pred_check
    _
  $region15: #{sage_forward.4} parent=0 // pred_check_branch
    %19 = sbr.rel (0) target = $region17
  $region16: #{sage_forward.4} parent=0 // pred_region
    _
  $region17: #{sage_forward.4} parent=0 // pred_fallthru
    _
  // Predicated region
  $region18: #{sage_forward.4} parent=0 // pred_check
    _
  $region19: #{sage_forward.4} parent=0 // pred_check_branch
    %21 = sbr.rel (0) target = $region21
  $region20: #{sage_forward.4} parent=0 // pred_region
    _
  $region21: #{sage_forward.4} parent=0 // pred_fallthru
    _
  // Predicated region
  $region22: #{sage_forward.4} parent=0 // pred_check
    _
  $region23: #{sage_forward.4} parent=0 // pred_check_branch
    %23 = sbr.rel (0) target = $region25
  $region24: #{sage_forward.4} parent=0 // pred_region
    _
  $region25: #{sage_forward.4} parent=0 // pred_fallthru
    _
  // Predicated region
  $region26: #{sage_forward.4} parent=0 // pred_check
    _
  $region27: #{sage_forward.4} parent=0 // pred_check_branch
    %25 = sbr.rel (0) target = $region29
  $region28: #{sage_forward.4} parent=0 // pred_region
    _
  $region29: #{sage_forward.4} parent=0 // pred_fallthru
    _
  %p26 = scmp.eq.s32.totalorder 0, 0
  // Predicated region
  $region30: #{sage_forward.4} parent=0 // pred_check
    %p27 = pneg %p26
  $region31: #{sage_forward.4} parent=0 // pred_check_branch
    %29 = sbr.rel (%p27) target = $region33
  $region32: #{sage_forward.4} parent=0 // pred_region
    %30 = vst [vmem:[#allocation2] sm:$0xff] 0.0
    %31 = vst [vmem:[#allocation2 + $0x8] sm:$0xff] 0.0
    %32 = vst [vmem:[#allocation2 + $0x10] sm:$0xff] 0.0
    %33 = vst [vmem:[#allocation2 + $0x18] sm:$0xff] 0.0
  $region33: #{sage_forward.4} parent=0 // pred_fallthru
    _
  %v34 = vld [vmem:[#allocation2] sm:$0xff]
  %v35 = vld [vmem:[#allocation2 + $0x8] sm:$0xff]
  %v36 = vld [vmem:[#allocation2 + $0x10] sm:$0xff]
  %v37 = vld [vmem:[#allocation2 + $0x18] sm:$0xff]
  %v38 = vld [vmem:[%s0] sm:$0xf]
  %v39 = vld [vmem:[%s0 + $0x4] sm:$0xf]
  %v40 = vld [vmem:[%s0 + $0x8] sm:$0xf]
  %v41 = vld [vmem:[%s0 + $0xc] sm:$0xf]
  %v42 = vld [vmem:[%s2] sm:$0xf]
  %v43 = vld [vmem:[%s2 + $0x4] sm:$0xf]
  %v44 = vld [vmem:[%s2 + $0x8] sm:$0xf]
  %v45 = vld [vmem:[%s2 + $0xc] sm:$0xf]
  %v46 = vld [vmem:[%s2 + $0x10] sm:$0xf]
  %v47 = vld [vmem:[%s2 + $0x14] sm:$0xf]
  %v48 = vld [vmem:[%s2 + $0x18] sm:$0xf]
  %v49 = vld [vmem:[%s2 + $0x1c] sm:$0xf]
  %v50 = vld [vmem:[%s2 + $0x20] sm:$0xf]
  %v51 = vld [vmem:[%s2 + $0x24] sm:$0xf]
  %v52 = vld [vmem:[%s2 + $0x28] sm:$0xf]
  %v53 = vld [vmem:[%s2 + $0x2c] sm:$0xf]
  %v54 = vld [vmem:[%s2 + $0x30] sm:$0xf]
  %v55 = vld [vmem:[%s2 + $0x34] sm:$0xf]
  %v56 = vld [vmem:[%s2 + $0x38] sm:$0xf]
  %v57 = vld [vmem:[%s2 + $0x3c] sm:$0xf]
  %v62 = vunpack.c.l.b16 %v38
  %v63 = vunpack.c.l.b16 %v39
  %v64 = vunpack.c.l.b16 %v40
  %v65 = vunpack.c.l.b16 %v41
  %v66 = vpack.c.b16 %v63, %v62
  %v67 = vpack.c.b16 %v65, %v64
  %v86 = vunpack.c.l.b16 %v42
  %v87 = vunpack.c.l.b16 %v43
  %v88 = vunpack.c.l.b16 %v44
  %v89 = vunpack.c.l.b16 %v45
  %v90 = vunpack.c.l.b16 %v46
  %v91 = vunpack.c.l.b16 %v47
  %v92 = vunpack.c.l.b16 %v48
  %v93 = vunpack.c.l.b16 %v49
  %v94 = vunpack.c.l.b16 %v50
  %v95 = vunpack.c.l.b16 %v51
  %v96 = vunpack.c.l.b16 %v52
  %v97 = vunpack.c.l.b16 %v53
  %v98 = vunpack.c.l.b16 %v54
  %v99 = vunpack.c.l.b16 %v55
  %v100 = vunpack.c.l.b16 %v56
  %v101 = vunpack.c.l.b16 %v57
  %v102 = vpack.c.b16 %v87, %v86
  %v103 = vpack.c.b16 %v89, %v88
  %v104 = vpack.c.b16 %v91, %v90
  %v105 = vpack.c.b16 %v93, %v92
  %v106 = vpack.c.b16 %v95, %v94
  %v107 = vpack.c.b16 %v97, %v96
  %v108 = vpack.c.b16 %v99, %v98
  %v109 = vpack.c.b16 %v101, %v100
  %118 = vmatpush.bf16.msra.mxu0 %v109
  %119 = vmatpush.bf16.msra.mxu0 %v108
  %120 = vmatpush.bf16.msra.mxu0 %v107
  %121 = vmatpush.bf16.msra.mxu0 %v106
  %122 = vmatpush.bf16.msra.mxu0 %v105
  %123 = vmatpush.bf16.msra.mxu0 %v104
  %124 = vmatpush.bf16.msra.mxu0 %v103
  %125 = vmatpush.bf16.msra.mxu0 %v102
  %126 = vmatmul.bf16.gmra.mxu0 %v66
  %v127 = vpop.f32.mrf.mxu0
  %v128 = vadd.f32 0.0, %v127
  %v129 = vpop.f32.mrf.mxu0
  %v130 = vadd.f32 0.0, %v129
  %131 = vmatmul.bf16.gmra.mxu0 %v67
  %v132 = vpop.f32.mrf.mxu0
  %v133 = vadd.f32 0.0, %v132
  %v134 = vpop.f32.mrf.mxu0
  %v135 = vadd.f32 0.0, %v134
  %136 = vdwg.mxu0
  %v137 = vadd.f32 %v34, %v128
  %v138 = vadd.f32 %v35, %v130
  %v139 = vadd.f32 %v36, %v133
  %v140 = vadd.f32 %v37, %v135
  %141 = vst [vmem:[#allocation2] sm:$0xff] %v137
  %142 = vst [vmem:[#allocation2 + $0x8] sm:$0xff] %v138
  %143 = vst [vmem:[#allocation2 + $0x10] sm:$0xff] %v139
  %144 = vst [vmem:[#allocation2 + $0x18] sm:$0xff] %v140
  // Predicated region
  $region34: #{sage_forward.4} parent=0 // pred_check
    %p145 = pneg %p26
  $region35: #{sage_forward.4} parent=0 // pred_check_branch
    %147 = sbr.rel (%p145) target = $region37
  $region36: #{sage_forward.4} parent=0 // pred_region
    %v148 = vld [vmem:[#allocation2] sm:$0xff]
    %v149 = vld [vmem:[#allocation2 + $0x8] sm:$0xff]
    %v150 = vld [vmem:[#allocation2 + $0x10] sm:$0xff]
    %v151 = vld [vmem:[#allocation2 + $0x18] sm:$0xff]
    %v152 = vld [vmem:[%s1] sm:$0xff]
    %v153 = vld [vmem:[%s1 + $0x8] sm:$0xff]
    %v154 = vld [vmem:[%s1 + $0x10] sm:$0xff]
    %v155 = vld [vmem:[%s1 + $0x18] sm:$0xff]
    %157 = vset.pattern.permute.xlu0 0
    %158 = vperm.xlu0 %157, %v152
    %v159 = vpop.permute.xlu0 %158
    %162 = vset.pattern.permute.xlu0 0
    %163 = vperm.xlu0 %162, %v153
    %v164 = vpop.permute.xlu0 %163
    %167 = vset.pattern.permute.xlu0 0
    %168 = vperm.xlu0 %167, %v154
    %v169 = vpop.permute.xlu0 %168
    %172 = vset.pattern.permute.xlu0 0
    %173 = vperm.xlu0 %172, %v155
    %v174 = vpop.permute.xlu0 %173
    %v176 = vmul.f32 %v148, %v159
    %v177 = vmul.f32 %v149, %v164
    %v178 = vmul.f32 %v150, %v169
    %v179 = vmul.f32 %v151, %v174
    %v180 = vld [vmem:[%s3] sm:$0xf]
    %v181 = vld [vmem:[%s3 + $0x4] sm:$0xf]
    %v182 = vld [vmem:[%s3 + $0x8] sm:$0xf]
    %v183 = vld [vmem:[%s3 + $0xc] sm:$0xf]
    %v184 = vld [vmem:[%s4] sm:$0xf]
    %v185 = vld [vmem:[%s4 + $0x4] sm:$0xf]
    %v186 = vld [vmem:[%s4 + $0x8] sm:$0xf]
    %v187 = vld [vmem:[%s4 + $0xc] sm:$0xf]
    %v188 = vld [vmem:[%s4 + $0x10] sm:$0xf]
    %v189 = vld [vmem:[%s4 + $0x14] sm:$0xf]
    %v190 = vld [vmem:[%s4 + $0x18] sm:$0xf]
    %v191 = vld [vmem:[%s4 + $0x1c] sm:$0xf]
    %v192 = vld [vmem:[%s4 + $0x20] sm:$0xf]
    %v193 = vld [vmem:[%s4 + $0x24] sm:$0xf]
    %v194 = vld [vmem:[%s4 + $0x28] sm:$0xf]
    %v195 = vld [vmem:[%s4 + $0x2c] sm:$0xf]
    %v196 = vld [vmem:[%s4 + $0x30] sm:$0xf]
    %v197 = vld [vmem:[%s4 + $0x34] sm:$0xf]
    %v198 = vld [vmem:[%s4 + $0x38] sm:$0xf]
    %v199 = vld [vmem:[%s4 + $0x3c] sm:$0xf]
    %v200 = vpack.c.bf16 %v177, %v176
    %v201 = vpack.c.bf16 %v179, %v178
    %v202 = vld [vmem:[%s5] sm:$0xf]
    %v203 = vld [vmem:[%s5 + $0x4] sm:$0xf]
    %v204 = vld [vmem:[%s5 + $0x8] sm:$0xf]
    %v205 = vld [vmem:[%s5 + $0xc] sm:$0xf]
    %v206 = vld [vmem:[%s5 + $0x10] sm:$0xf]
    %v207 = vld [vmem:[%s5 + $0x14] sm:$0xf]
    %v208 = vld [vmem:[%s5 + $0x18] sm:$0xf]
    %v209 = vld [vmem:[%s5 + $0x1c] sm:$0xf]
    %v210 = vld [vmem:[%s5 + $0x20] sm:$0xf]
    %v211 = vld [vmem:[%s5 + $0x24] sm:$0xf]
    %v212 = vld [vmem:[%s5 + $0x28] sm:$0xf]
    %v213 = vld [vmem:[%s5 + $0x2c] sm:$0xf]
    %v214 = vld [vmem:[%s5 + $0x30] sm:$0xf]
    %v215 = vld [vmem:[%s5 + $0x34] sm:$0xf]
    %v216 = vld [vmem:[%s5 + $0x38] sm:$0xf]
    %v217 = vld [vmem:[%s5 + $0x3c] sm:$0xf]
    %v234 = vunpack.c.l.b16 %v202
    %v235 = vunpack.c.l.b16 %v203
    %v236 = vunpack.c.l.b16 %v204
    %v237 = vunpack.c.l.b16 %v205
    %v238 = vunpack.c.l.b16 %v206
    %v239 = vunpack.c.l.b16 %v207
    %v240 = vunpack.c.l.b16 %v208
    %v241 = vunpack.c.l.b16 %v209
    %v242 = vunpack.c.l.b16 %v210
    %v243 = vunpack.c.l.b16 %v211
    %v244 = vunpack.c.l.b16 %v212
    %v245 = vunpack.c.l.b16 %v213
    %v246 = vunpack.c.l.b16 %v214
    %v247 = vunpack.c.l.b16 %v215
    %v248 = vunpack.c.l.b16 %v216
    %v249 = vunpack.c.l.b16 %v217
    %v250 = vpack.c.b16 %v235, %v234
    %v251 = vpack.c.b16 %v237, %v236
    %v252 = vpack.c.b16 %v239, %v238
    %v253 = vpack.c.b16 %v241, %v240
    %v254 = vpack.c.b16 %v243, %v242
    %v255 = vpack.c.b16 %v245, %v244
    %v256 = vpack.c.b16 %v247, %v246
    %v257 = vpack.c.b16 %v249, %v248
    %266 = vmatpush.bf16.msra.mxu0 %v257
    %267 = vmatpush.bf16.msra.mxu0 %v256
    %268 = vmatpush.bf16.msra.mxu0 %v255
    %269 = vmatpush.bf16.msra.mxu0 %v254
    %270 = vmatpush.bf16.msra.mxu0 %v253
    %271 = vmatpush.bf16.msra.mxu0 %v252
    %272 = vmatpush.bf16.msra.mxu0 %v251
    %273 = vmatpush.bf16.msra.mxu0 %v250
    %274 = vmatmul.bf16.gmra.mxu0 %v200
    %v275 = vpop.f32.mrf.mxu0
    %v276 = vadd.f32 0.0, %v275
    %v277 = vpop.f32.mrf.mxu0
    %v278 = vadd.f32 0.0, %v277
    %279 = vmatmul.bf16.gmra.mxu0 %v201
    %v280 = vpop.f32.mrf.mxu0
    %v281 = vadd.f32 0.0, %v280
    %v282 = vpop.f32.mrf.mxu0
    %v283 = vadd.f32 0.0, %v282
    %284 = vdwg.mxu0
    %v289 = vunpack.c.l.b16 %v180
    %v290 = vunpack.c.l.b16 %v181
    %v291 = vunpack.c.l.b16 %v182
    %v292 = vunpack.c.l.b16 %v183
    %v293 = vpack.c.b16 %v290, %v289
    %v294 = vpack.c.b16 %v292, %v291
    %v313 = vunpack.c.l.b16 %v184
    %v314 = vunpack.c.l.b16 %v185
    %v315 = vunpack.c.l.b16 %v186
    %v316 = vunpack.c.l.b16 %v187
    %v317 = vunpack.c.l.b16 %v188
    %v318 = vunpack.c.l.b16 %v189
    %v319 = vunpack.c.l.b16 %v190
    %v320 = vunpack.c.l.b16 %v191
    %v321 = vunpack.c.l.b16 %v192
    %v322 = vunpack.c.l.b16 %v193
    %v323 = vunpack.c.l.b16 %v194
    %v324 = vunpack.c.l.b16 %v195
    %v325 = vunpack.c.l.b16 %v196
    %v326 = vunpack.c.l.b16 %v197
    %v327 = vunpack.c.l.b16 %v198
    %v328 = vunpack.c.l.b16 %v199
    %v329 = vpack.c.b16 %v314, %v313
    %v330 = vpack.c.b16 %v316, %v315
    %v331 = vpack.c.b16 %v318, %v317
    %v332 = vpack.c.b16 %v320, %v319
    %v333 = vpack.c.b16 %v322, %v321
    %v334 = vpack.c.b16 %v324, %v323
    %v335 = vpack.c.b16 %v326, %v325
    %v336 = vpack.c.b16 %v328, %v327
    %345 = vmatpush.bf16.msra.mxu0 %v336
    %346 = vmatpush.bf16.msra.mxu0 %v335
    %347 = vmatpush.bf16.msra.mxu0 %v334
    %348 = vmatpush.bf16.msra.mxu0 %v333
    %349 = vmatpush.bf16.msra.mxu0 %v332
    %350 = vmatpush.bf16.msra.mxu0 %v331
    %351 = vmatpush.bf16.msra.mxu0 %v330
    %352 = vmatpush.bf16.msra.mxu0 %v329
    %353 = vmatmul.bf16.gmra.mxu0 %v293
    %v354 = vpop.f32.mrf.mxu0
    %v355 = vadd.f32 %v276, %v354
    %v356 = vpop.f32.mrf.mxu0
    %v357 = vadd.f32 %v278, %v356
    %358 = vmatmul.bf16.gmra.mxu0 %v294
    %v359 = vpop.f32.mrf.mxu0
    %v360 = vadd.f32 %v281, %v359
    %v361 = vpop.f32.mrf.mxu0
    %v362 = vadd.f32 %v283, %v361
    %363 = vdwg.mxu0
    %v364 = vld [vmem:[%s6] sm:$0x1]
    %v366 = vperm.slane %v364, 0
    %v368 = vadd.f32 %v355, %v366
    %v369 = vadd.f32 %v357, %v366
    %v370 = vadd.f32 %v360, %v366
    %v371 = vadd.f32 %v362, %v366
    %v372 = vmax.f32 %v368, 0.0
    %v373 = vmax.f32 %v369, 0.0
    %v374 = vmax.f32 %v370, 0.0
    %v375 = vmax.f32 %v371, 0.0
    %v376 = vpack.c.bf16 %v372, %v372
    %v377 = vpack.c.bf16 %v373, %v373
    %v378 = vpack.c.bf16 %v374, %v374
    %v379 = vpack.c.bf16 %v375, %v375
    %380 = vst [vmem:[%s7] sm:$0xf] %v376
    %381 = vst [vmem:[%s7 + $0x4] sm:$0xf] %v377
    %382 = vst [vmem:[%s7 + $0x8] sm:$0xf] %v378
    %383 = vst [vmem:[%s7 + $0xc] sm:$0xf] %v379
  $region37: #{sage_forward.4} parent=0 // pred_fallthru
    _
  // Predicated region
  $region38: #{sage_forward.4} parent=0 // pred_check
    _
  $region39: #{sage_forward.4} parent=0 // pred_check_branch
    %385 = sbr.rel (0) target = $region41
  $region40: #{sage_forward.4} parent=0 // pred_region
    _
  $region41: #{sage_forward.4} parent=0 // pred_fallthru
    _
  // Predicated region
  $region42: #{sage_forward.4} parent=0 // pred_check
    _
  $region43: #{sage_forward.4} parent=0 // pred_check_branch
    %387 = sbr.rel (0) target = $region45
  $region44: #{sage_forward.4} parent=0 // pred_region
    _
  $region45: #{sage_forward.4} parent=0 // pred_fallthru
    _

// kernel: sage_forward.5
$region0: #{sage_forward.5}
  #allocation0 [shape = 'u32[]', space=smem, size = 0x4, offset = 0x4, fixed_abs, tag = 'smem constant byte address 0x4 - core index']
  #allocation1 [shape = 'u32[72,128]{1,0:T(1,128)}', space=vmem, size = 0x9000, scoped, tag = 'internal scratch']
  #allocation2 [shape = 'f32[16,128]{1,0:T(8,128)}', space=vmem, size = 0x2000, scoped, tag = 'scratch operand']
  %s0 = inlined_call_operand.vmem [shape: bf16[16,128], index: 0, kind: input, shape index: {}]
  %s1 = inlined_call_operand.vmem [shape: f32[16,1], index: 1, kind: input, shape index: {}]
  %s2 = inlined_call_operand.vmem [shape: bf16[128,128], index: 2, kind: input, shape index: {}, may-alias: {2,3}]
  %s3 = inlined_call_operand.vmem [shape: bf16[128,128], index: 3, kind: input, shape index: {}, may-alias: {2,3}]
  %s4 = inlined_call_operand.vmem [shape: bf16[128,128], index: 4, kind: input, shape index: {}]
  %s5 = inlined_call_operand.vmem [shape: bf16[128,128], index: 5, kind: input, shape index: {}]
  %s6 = inlined_call_operand.vmem [shape: f32[1,128], index: 6, kind: input, shape index: {}]
  %s7 = inlined_call_operand.vmem [shape: f32[16,128], index: 7, kind: output, shape index: {}]
  %s8 = sld [smem:[#allocation0]]
  $region46: #{sage_forward.5} parent=0
    _
  %s10 = ssub.s32 1, %s8
  %s11 = scalar_select 0, %s10, %s8
  // Predicated region
  $region2: #{sage_forward.5} parent=0 // pred_check
    _
  $region3: #{sage_forward.5} parent=0 // pred_check_branch
    %13 = sbr.rel (0) target = $region5
  $region4: #{sage_forward.5} parent=0 // pred_region
    _
  $region5: #{sage_forward.5} parent=0 // pred_fallthru
    _
  // Predicated region
  $region6: #{sage_forward.5} parent=0 // pred_check
    _
  $region7: #{sage_forward.5} parent=0 // pred_check_branch
    %15 = sbr.rel (0) target = $region9
  $region8: #{sage_forward.5} parent=0 // pred_region
    _
  $region9: #{sage_forward.5} parent=0 // pred_fallthru
    _
  // Predicated region
  $region10: #{sage_forward.5} parent=0 // pred_check
    _
  $region11: #{sage_forward.5} parent=0 // pred_check_branch
    %17 = sbr.rel (0) target = $region13
  $region12: #{sage_forward.5} parent=0 // pred_region
    _
  $region13: #{sage_forward.5} parent=0 // pred_fallthru
    _
  // Predicated region
  $region14: #{sage_forward.5} parent=0 // pred_check
    _
  $region15: #{sage_forward.5} parent=0 // pred_check_branch
    %19 = sbr.rel (0) target = $region17
  $region16: #{sage_forward.5} parent=0 // pred_region
    _
  $region17: #{sage_forward.5} parent=0 // pred_fallthru
    _
  // Predicated region
  $region18: #{sage_forward.5} parent=0 // pred_check
    _
  $region19: #{sage_forward.5} parent=0 // pred_check_branch
    %21 = sbr.rel (0) target = $region21
  $region20: #{sage_forward.5} parent=0 // pred_region
    _
  $region21: #{sage_forward.5} parent=0 // pred_fallthru
    _
  // Predicated region
  $region22: #{sage_forward.5} parent=0 // pred_check
    _
  $region23: #{sage_forward.5} parent=0 // pred_check_branch
    %23 = sbr.rel (0) target = $region25
  $region24: #{sage_forward.5} parent=0 // pred_region
    _
  $region25: #{sage_forward.5} parent=0 // pred_fallthru
    _
  // Predicated region
  $region26: #{sage_forward.5} parent=0 // pred_check
    _
  $region27: #{sage_forward.5} parent=0 // pred_check_branch
    %25 = sbr.rel (0) target = $region29
  $region28: #{sage_forward.5} parent=0 // pred_region
    _
  $region29: #{sage_forward.5} parent=0 // pred_fallthru
    _
  %p26 = scmp.eq.s32.totalorder 0, 0
  // Predicated region
  $region30: #{sage_forward.5} parent=0 // pred_check
    %p27 = pneg %p26
  $region31: #{sage_forward.5} parent=0 // pred_check_branch
    %29 = sbr.rel (%p27) target = $region33
  $region32: #{sage_forward.5} parent=0 // pred_region
    %30 = vst [vmem:[#allocation2] sm:$0xff] 0.0
    %31 = vst [vmem:[#allocation2 + $0x8] sm:$0xff] 0.0
  $region33: #{sage_forward.5} parent=0 // pred_fallthru
    _
  %v32 = vld [vmem:[#allocation2] sm:$0xff]
  %v33 = vld [vmem:[#allocation2 + $0x8] sm:$0xff]
  %v34 = vld [vmem:[%s0] sm:$0xf]
  %v35 = vld [vmem:[%s0 + $0x4] sm:$0xf]
  %v36 = vld [vmem:[%s2] sm:$0xf]
  %v37 = vld [vmem:[%s2 + $0x4] sm:$0xf]
  %v38 = vld [vmem:[%s2 + $0x8] sm:$0xf]
  %v39 = vld [vmem:[%s2 + $0xc] sm:$0xf]
  %v40 = vld [vmem:[%s2 + $0x10] sm:$0xf]
  %v41 = vld [vmem:[%s2 + $0x14] sm:$0xf]
  %v42 = vld [vmem:[%s2 + $0x18] sm:$0xf]
  %v43 = vld [vmem:[%s2 + $0x1c] sm:$0xf]
  %v44 = vld [vmem:[%s2 + $0x20] sm:$0xf]
  %v45 = vld [vmem:[%s2 + $0x24] sm:$0xf]
  %v46 = vld [vmem:[%s2 + $0x28] sm:$0xf]
  %v47 = vld [vmem:[%s2 + $0x2c] sm:$0xf]
  %v48 = vld [vmem:[%s2 + $0x30] sm:$0xf]
  %v49 = vld [vmem:[%s2 + $0x34] sm:$0xf]
  %v50 = vld [vmem:[%s2 + $0x38] sm:$0xf]
  %v51 = vld [vmem:[%s2 + $0x3c] sm:$0xf]
  %v54 = vunpack.c.l.b16 %v34
  %v55 = vunpack.c.l.b16 %v35
  %v56 = vpack.c.b16 %v55, %v54
  %v74 = vunpack.c.l.b16 %v36
  %v75 = vunpack.c.l.b16 %v37
  %v76 = vunpack.c.l.b16 %v38
  %v77 = vunpack.c.l.b16 %v39
  %v78 = vunpack.c.l.b16 %v40
  %v79 = vunpack.c.l.b16 %v41
  %v80 = vunpack.c.l.b16 %v42
  %v81 = vunpack.c.l.b16 %v43
  %v82 = vunpack.c.l.b16 %v44
  %v83 = vunpack.c.l.b16 %v45
  %v84 = vunpack.c.l.b16 %v46
  %v85 = vunpack.c.l.b16 %v47
  %v86 = vunpack.c.l.b16 %v48
  %v87 = vunpack.c.l.b16 %v49
  %v88 = vunpack.c.l.b16 %v50
  %v89 = vunpack.c.l.b16 %v51
  %v90 = vpack.c.b16 %v75, %v74
  %v91 = vpack.c.b16 %v77, %v76
  %v92 = vpack.c.b16 %v79, %v78
  %v93 = vpack.c.b16 %v81, %v80
  %v94 = vpack.c.b16 %v83, %v82
  %v95 = vpack.c.b16 %v85, %v84
  %v96 = vpack.c.b16 %v87, %v86
  %v97 = vpack.c.b16 %v89, %v88
  %106 = vmatpush.bf16.msra.mxu0 %v97
  %107 = vmatpush.bf16.msra.mxu0 %v96
  %108 = vmatpush.bf16.msra.mxu0 %v95
  %109 = vmatpush.bf16.msra.mxu0 %v94
  %110 = vmatpush.bf16.msra.mxu0 %v93
  %111 = vmatpush.bf16.msra.mxu0 %v92
  %112 = vmatpush.bf16.msra.mxu0 %v91
  %113 = vmatpush.bf16.msra.mxu0 %v90
  %114 = vmatmul.bf16.gmra.mxu0 %v56
  %v115 = vpop.f32.mrf.mxu0
  %v116 = vadd.f32 0.0, %v115
  %v117 = vpop.f32.mrf.mxu0
  %v118 = vadd.f32 0.0, %v117
  %119 = vdwg.mxu0
  %v120 = vadd.f32 %v32, %v116
  %v121 = vadd.f32 %v33, %v118
  %122 = vst [vmem:[#allocation2] sm:$0xff] %v120
  %123 = vst [vmem:[#allocation2 + $0x8] sm:$0xff] %v121
  // Predicated region
  $region34: #{sage_forward.5} parent=0 // pred_check
    %p124 = pneg %p26
  $region35: #{sage_forward.5} parent=0 // pred_check_branch
    %126 = sbr.rel (%p124) target = $region37
  $region36: #{sage_forward.5} parent=0 // pred_region
    %v127 = vld [vmem:[#allocation2] sm:$0xff]
    %v128 = vld [vmem:[#allocation2 + $0x8] sm:$0xff]
    %v129 = vld [vmem:[%s1] sm:$0xff]
    %v130 = vld [vmem:[%s1 + $0x8] sm:$0xff]
    %132 = vset.pattern.permute.xlu0 0
    %133 = vperm.xlu0 %132, %v129
    %v134 = vpop.permute.xlu0 %133
    %137 = vset.pattern.permute.xlu0 0
    %138 = vperm.xlu0 %137, %v130
    %v139 = vpop.permute.xlu0 %138
    %v141 = vmul.f32 %v127, %v134
    %v142 = vmul.f32 %v128, %v139
    %v143 = vld [vmem:[%s3] sm:$0xf]
    %v144 = vld [vmem:[%s3 + $0x4] sm:$0xf]
    %v145 = vld [vmem:[%s4] sm:$0xf]
    %v146 = vld [vmem:[%s4 + $0x4] sm:$0xf]
    %v147 = vld [vmem:[%s4 + $0x8] sm:$0xf]
    %v148 = vld [vmem:[%s4 + $0xc] sm:$0xf]
    %v149 = vld [vmem:[%s4 + $0x10] sm:$0xf]
    %v150 = vld [vmem:[%s4 + $0x14] sm:$0xf]
    %v151 = vld [vmem:[%s4 + $0x18] sm:$0xf]
    %v152 = vld [vmem:[%s4 + $0x1c] sm:$0xf]
    %v153 = vld [vmem:[%s4 + $0x20] sm:$0xf]
    %v154 = vld [vmem:[%s4 + $0x24] sm:$0xf]
    %v155 = vld [vmem:[%s4 + $0x28] sm:$0xf]
    %v156 = vld [vmem:[%s4 + $0x2c] sm:$0xf]
    %v157 = vld [vmem:[%s4 + $0x30] sm:$0xf]
    %v158 = vld [vmem:[%s4 + $0x34] sm:$0xf]
    %v159 = vld [vmem:[%s4 + $0x38] sm:$0xf]
    %v160 = vld [vmem:[%s4 + $0x3c] sm:$0xf]
    %v161 = vpack.c.bf16 %v142, %v141
    %v162 = vld [vmem:[%s5] sm:$0xf]
    %v163 = vld [vmem:[%s5 + $0x4] sm:$0xf]
    %v164 = vld [vmem:[%s5 + $0x8] sm:$0xf]
    %v165 = vld [vmem:[%s5 + $0xc] sm:$0xf]
    %v166 = vld [vmem:[%s5 + $0x10] sm:$0xf]
    %v167 = vld [vmem:[%s5 + $0x14] sm:$0xf]
    %v168 = vld [vmem:[%s5 + $0x18] sm:$0xf]
    %v169 = vld [vmem:[%s5 + $0x1c] sm:$0xf]
    %v170 = vld [vmem:[%s5 + $0x20] sm:$0xf]
    %v171 = vld [vmem:[%s5 + $0x24] sm:$0xf]
    %v172 = vld [vmem:[%s5 + $0x28] sm:$0xf]
    %v173 = vld [vmem:[%s5 + $0x2c] sm:$0xf]
    %v174 = vld [vmem:[%s5 + $0x30] sm:$0xf]
    %v175 = vld [vmem:[%s5 + $0x34] sm:$0xf]
    %v176 = vld [vmem:[%s5 + $0x38] sm:$0xf]
    %v177 = vld [vmem:[%s5 + $0x3c] sm:$0xf]
    %v194 = vunpack.c.l.b16 %v162
    %v195 = vunpack.c.l.b16 %v163
    %v196 = vunpack.c.l.b16 %v164
    %v197 = vunpack.c.l.b16 %v165
    %v198 = vunpack.c.l.b16 %v166
    %v199 = vunpack.c.l.b16 %v167
    %v200 = vunpack.c.l.b16 %v168
    %v201 = vunpack.c.l.b16 %v169
    %v202 = vunpack.c.l.b16 %v170
    %v203 = vunpack.c.l.b16 %v171
    %v204 = vunpack.c.l.b16 %v172
    %v205 = vunpack.c.l.b16 %v173
    %v206 = vunpack.c.l.b16 %v174
    %v207 = vunpack.c.l.b16 %v175
    %v208 = vunpack.c.l.b16 %v176
    %v209 = vunpack.c.l.b16 %v177
    %v210 = vpack.c.b16 %v195, %v194
    %v211 = vpack.c.b16 %v197, %v196
    %v212 = vpack.c.b16 %v199, %v198
    %v213 = vpack.c.b16 %v201, %v200
    %v214 = vpack.c.b16 %v203, %v202
    %v215 = vpack.c.b16 %v205, %v204
    %v216 = vpack.c.b16 %v207, %v206
    %v217 = vpack.c.b16 %v209, %v208
    %226 = vmatpush.bf16.msra.mxu0 %v217
    %227 = vmatpush.bf16.msra.mxu0 %v216
    %228 = vmatpush.bf16.msra.mxu0 %v215
    %229 = vmatpush.bf16.msra.mxu0 %v214
    %230 = vmatpush.bf16.msra.mxu0 %v213
    %231 = vmatpush.bf16.msra.mxu0 %v212
    %232 = vmatpush.bf16.msra.mxu0 %v211
    %233 = vmatpush.bf16.msra.mxu0 %v210
    %234 = vmatmul.bf16.gmra.mxu0 %v161
    %v235 = vpop.f32.mrf.mxu0
    %v236 = vadd.f32 0.0, %v235
    %v237 = vpop.f32.mrf.mxu0
    %v238 = vadd.f32 0.0, %v237
    %239 = vdwg.mxu0
    %v242 = vunpack.c.l.b16 %v143
    %v243 = vunpack.c.l.b16 %v144
    %v244 = vpack.c.b16 %v243, %v242
    %v262 = vunpack.c.l.b16 %v145
    %v263 = vunpack.c.l.b16 %v146
    %v264 = vunpack.c.l.b16 %v147
    %v265 = vunpack.c.l.b16 %v148
    %v266 = vunpack.c.l.b16 %v149
    %v267 = vunpack.c.l.b16 %v150
    %v268 = vunpack.c.l.b16 %v151
    %v269 = vunpack.c.l.b16 %v152
    %v270 = vunpack.c.l.b16 %v153
    %v271 = vunpack.c.l.b16 %v154
    %v272 = vunpack.c.l.b16 %v155
    %v273 = vunpack.c.l.b16 %v156
    %v274 = vunpack.c.l.b16 %v157
    %v275 = vunpack.c.l.b16 %v158
    %v276 = vunpack.c.l.b16 %v159
    %v277 = vunpack.c.l.b16 %v160
    %v278 = vpack.c.b16 %v263, %v262
    %v279 = vpack.c.b16 %v265, %v264
    %v280 = vpack.c.b16 %v267, %v266
    %v281 = vpack.c.b16 %v269, %v268
    %v282 = vpack.c.b16 %v271, %v270
    %v283 = vpack.c.b16 %v273, %v272
    %v284 = vpack.c.b16 %v275, %v274
    %v285 = vpack.c.b16 %v277, %v276
    %294 = vmatpush.bf16.msra.mxu0 %v285
    %295 = vmatpush.bf16.msra.mxu0 %v284
    %296 = vmatpush.bf16.msra.mxu0 %v283
    %297 = vmatpush.bf16.msra.mxu0 %v282
    %298 = vmatpush.bf16.msra.mxu0 %v281
    %299 = vmatpush.bf16.msra.mxu0 %v280
    %300 = vmatpush.bf16.msra.mxu0 %v279
    %301 = vmatpush.bf16.msra.mxu0 %v278
    %302 = vmatmul.bf16.gmra.mxu0 %v244
    %v303 = vpop.f32.mrf.mxu0
    %v304 = vadd.f32 %v236, %v303
    %v305 = vpop.f32.mrf.mxu0
    %v306 = vadd.f32 %v238, %v305
    %307 = vdwg.mxu0
    %v308 = vld [vmem:[%s6] sm:$0x1]
    %v310 = vperm.slane %v308, 0
    %v312 = vadd.f32 %v304, %v310
    %v313 = vadd.f32 %v306, %v310
    %314 = vst [vmem:[%s7] sm:$0xff] %v312
    %315 = vst [vmem:[%s7 + $0x8] sm:$0xff] %v313
  $region37: #{sage_forward.5} parent=0 // pred_fallthru
    _
  // Predicated region
  $region38: #{sage_forward.5} parent=0 // pred_check
    _
  $region39: #{sage_forward.5} parent=0 // pred_check_branch
    %317 = sbr.rel (0) target = $region41
  $region40: #{sage_forward.5} parent=0 // pred_region
    _
  $region41: #{sage_forward.5} parent=0 // pred_fallthru
    _
  // Predicated region
  $region42: #{sage_forward.5} parent=0 // pred_check
    _
  $region43: #{sage_forward.5} parent=0 // pred_check_branch
    %319 = sbr.rel (0) target = $region45
  $region44: #{sage_forward.5} parent=0 // pred_region
    _
  $region45: #{sage_forward.5} parent=0 // pred_fallthru
    _

</llo_original>
